<compile_context>
chip_gen: v7x
topology: tpu7x:2x2x1
jax: 0.10.0
libtpu: 0.0.40
codegen_flags: <defaults>
</compile_context>

<pallas_src>
import jax
import jax.numpy as jnp
from jax.experimental import pallas as pl
from jax.experimental.pallas import tpu as pltpu

NUM_GROUPS = 32      # GroupNorm(32, C)
GN_EPS = 1e-5


def make_pooled_attention_kernel(C, Lp, inv_sqrt_c):
    inv_lp = 1.0 / Lp

    def kernel(x_ref, pool_ref, up_ref, gmat_ref, gamma_ref, beta_ref,
               wqkv_ref, bqkv_ref, win_ref, bin_ref,
               wop_ref, bop_ref, wout_ref, bout_ref, o_ref):
        # x_ref    : (C, HW)    one sample, channel-major, lane-dense last dim
        # pool_ref : (HW, Lp)   avg-pool matrix (1/scale^2 inside each pooled cell)
        # up_ref   : (Lp, HW)   nearest-upsample matrix (0/1)
        # gmat_ref : (C, C)     group-average matrix (1/group_size within a group)
        # gamma/beta           : (C, 1)   GroupNorm affine
        # wqkv/bqkv            : (3C, C) / (3C, 1)   1x1 qkv Conv1d
        # win/bin              : (3C, 3C) block-diag(Wq,Wk,Wv) / (3C, 1)  MHA in_proj
        # wop/bop              : (C, C) / (C, 1)     MHA out_proj
        # wout/bout            : (C, C) / (C, 1)     1x1 output Conv1d
        # o_ref    : (C, HW)
        x = x_ref[...]

        # --- avg_pool2d(scale): one GEMM over the full spatial axis (K = HW) ---
        pooled = jnp.dot(x, pool_ref[...], preferred_element_type=jnp.float32)       # (C, Lp)

        # --- GroupNorm(32, C): group stats via one (C, C) group-averaging GEMM ---
        gmat = gmat_ref[...]
        grp_x = jnp.dot(gmat, pooled, preferred_element_type=jnp.float32)            # (C, Lp)
        grp_x2 = jnp.dot(gmat, pooled * pooled, preferred_element_type=jnp.float32)  # (C, Lp)
        mean = jnp.sum(grp_x, axis=1, keepdims=True) * inv_lp                        # (C, 1)
        ex2 = jnp.sum(grp_x2, axis=1, keepdims=True) * inv_lp
        var = ex2 - mean * mean
        normed = (pooled - mean) * (jax.lax.rsqrt(var + GN_EPS) * gamma_ref[...]) + beta_ref[...]

        # --- qkv 1x1 Conv1d: single fused (3C, C) @ (C, Lp) GEMM ---
        qkv = jnp.dot(wqkv_ref[...], normed, preferred_element_type=jnp.float32) + bqkv_ref[...]

        # --- MHA in_proj (Wq, Wk, Wv) fused as one block-diagonal (3C, 3C) GEMM ---
        qkvp = jnp.dot(win_ref[...], qkv, preferred_element_type=jnp.float32) + bin_ref[...]
        q = qkvp[:C]            # (C, Lp)  sublane-aligned static slices
        k = qkvp[C:2 * C]
        v = qkvp[2 * C:]

        # --- single-head scaled dot-product attention over the pooled sequence ---
        scores = jnp.dot(q.T, k, preferred_element_type=jnp.float32) * inv_sqrt_c    # (Lp, Lp)
        m = jnp.max(scores, axis=-1, keepdims=True)
        e = jnp.exp(scores - m)
        p = e / jnp.sum(e, axis=-1, keepdims=True)
        ctx = jnp.dot(v, p.T, preferred_element_type=jnp.float32)                    # (C, Lp)

        # --- MHA out_proj, then the 1x1 output Conv1d ---
        a = jnp.dot(wop_ref[...], ctx, preferred_element_type=jnp.float32) + bop_ref[...]
        f = jnp.dot(wout_ref[...], a, preferred_element_type=jnp.float32) + bout_ref[...]

        # --- nearest upsample (one GEMM) + residual; lane-dense (HW) store ---
        up = jnp.dot(f, up_ref[...], preferred_element_type=jnp.float32)             # (C, HW)
        o_ref[...] = (x + up).astype(o_ref.dtype)

    return kernel


def pooled_attention_block(x, params, scale):
    """Forward pass of PooledAttentionBlock.  x: (B, C, H, W) NCHW, float32."""
    B, C, H, W = x.shape
    assert C % NUM_GROUPS == 0, "GroupNorm(32, C) requires C % 32 == 0"
    assert H % scale == 0 and W % scale == 0
    hp, wp = H // scale, W // scale
    Lp, HW = hp * wp, H * W
    gsize = C // NUM_GROUPS

    x_flat = x.reshape(B, C, HW)                       # pure reshape: no transpose / copy

    # --- constant layout matrices (tiny): pooling / upsample / group mixing as GEMMs ---
    pix = jnp.arange(HW)
    cell = (pix // W // scale) * wp + (pix % W) // scale
    onehot = (cell[:, None] == jnp.arange(Lp)[None, :]).astype(jnp.float32)   # (HW, Lp)
    pool_mat = onehot * (1.0 / (scale * scale))
    up_mat = onehot.T                                                         # (Lp, HW)
    grp_id = jnp.arange(C) // gsize
    gmat = (grp_id[:, None] == grp_id[None, :]).astype(jnp.float32) * (1.0 / gsize)  # (C, C)

    # --- parameters in channel-major kernel layout ---
    gamma = params["gn_weight"].reshape(C, 1)
    beta = params["gn_bias"].reshape(C, 1)
    wqkv = params["qkv_weight"][:, :, 0]               # (3C, C)
    bqkv = params["qkv_bias"].reshape(3 * C, 1)
    w_in = params["in_proj_weight"]                    # (3C, C)
    z = jnp.zeros((C, C), jnp.float32)
    win_blk = jnp.concatenate([                        # block-diag(Wq, Wk, Wv): (3C, 3C)
        jnp.concatenate([w_in[:C], z, z], axis=1),
        jnp.concatenate([z, w_in[C:2 * C], z], axis=1),
        jnp.concatenate([z, z, w_in[2 * C:]], axis=1),
    ], axis=0)
    b_in = params["in_proj_bias"].reshape(3 * C, 1)
    wop = params["out_proj_weight"]                    # (C, C)
    bop = params["out_proj_bias"].reshape(C, 1)
    wout = params["out_weight"][:, :, 0]               # (C, C)
    bout = params["out_bias"].reshape(C, 1)

    kernel = make_pooled_attention_kernel(C, Lp, inv_sqrt_c=1.0 / float(C) ** 0.5)

    out_flat = pl.pallas_call(
        kernel,
        out_shape=jax.ShapeDtypeStruct((B, C, HW), x.dtype),
        grid_spec=pltpu.PrefetchScalarGridSpec(
            num_scalar_prefetch=0,
            grid=(B,),
            in_specs=[
                pl.BlockSpec((None, C, HW), lambda b: (b, 0, 0)),   # x (batch squeezed)
                pl.BlockSpec((HW, Lp), lambda b: (0, 0)),           # pool matrix
                pl.BlockSpec((Lp, HW), lambda b: (0, 0)),           # upsample matrix
                pl.BlockSpec((C, C), lambda b: (0, 0)),             # group-average matrix
                pl.BlockSpec((C, 1), lambda b: (0, 0)),             # gn gamma
                pl.BlockSpec((C, 1), lambda b: (0, 0)),             # gn beta
                pl.BlockSpec((3 * C, C), lambda b: (0, 0)),         # qkv conv weight
                pl.BlockSpec((3 * C, 1), lambda b: (0, 0)),         # qkv conv bias
                pl.BlockSpec((3 * C, 3 * C), lambda b: (0, 0)),     # MHA in_proj (blkdiag)
                pl.BlockSpec((3 * C, 1), lambda b: (0, 0)),         # MHA in_proj bias
                pl.BlockSpec((C, C), lambda b: (0, 0)),             # MHA out_proj weight
                pl.BlockSpec((C, 1), lambda b: (0, 0)),             # MHA out_proj bias
                pl.BlockSpec((C, C), lambda b: (0, 0)),             # out conv weight
                pl.BlockSpec((C, 1), lambda b: (0, 0)),             # out conv bias
            ],
            out_specs=pl.BlockSpec((None, C, HW), lambda b: (b, 0, 0)),
        ),
        compiler_params=pltpu.CompilerParams(
            dimension_semantics=("parallel",)),
    )(x_flat, pool_mat, up_mat, gmat, gamma, beta,
      wqkv, bqkv, win_blk, b_in, wop, bop, wout, bout)

    return out_flat.reshape(B, C, H, W)


def reference(x, params, scale):
    """Pure-JAX reference mirroring the PyTorch forward."""
    B, C, H, W = x.shape
    s = scale
    hp, wp = H // s, W // s
    L = hp * wp
    pooled = x.reshape(B, C, hp, s, wp, s).mean(axis=(3, 5))        # avg_pool2d
    xf = pooled.reshape(B, C, L)
    gsize = C // NUM_GROUPS
    xg = xf.reshape(B, NUM_GROUPS, gsize * L)                       # GroupNorm(32, C)
    mu = xg.mean(axis=-1, keepdims=True)
    var = xg.var(axis=-1, keepdims=True)
    xn = ((xg - mu) / jnp.sqrt(var + GN_EPS)).reshape(B, C, L)
    xn = xn * params["gn_weight"][None, :, None] + params["gn_bias"][None, :, None]
    qkv = jnp.einsum("oc,bcl->blo", params["qkv_weight"][:, :, 0], xn) \
        + params["qkv_bias"][None, None, :]                          # (B, L, 3C)
    q, k, v = qkv[..., :C], qkv[..., C:2 * C], qkv[..., 2 * C:]
    wi, bi = params["in_proj_weight"], params["in_proj_bias"]
    qp = q @ wi[:C].T + bi[:C]
    kp = k @ wi[C:2 * C].T + bi[C:2 * C]
    vp = v @ wi[2 * C:].T + bi[2 * C:]
    scores = (qp / float(C) ** 0.5) @ jnp.swapaxes(kp, 1, 2)
    attn = jax.nn.softmax(scores, axis=-1)
    ctx = attn @ vp
    a = ctx @ params["out_proj_weight"].T + params["out_proj_bias"]
    a_cm = jnp.swapaxes(a, 1, 2)                                     # (B, C, L)
    f = jnp.einsum("oc,bcl->bol", params["out_weight"][:, :, 0], a_cm) \
        + params["out_bias"][None, :, None]
    f = f.reshape(B, C, hp, wp)
    up = jnp.repeat(jnp.repeat(f, s, axis=2), s, axis=3)             # nearest interpolate
    return x + up


if __name__ == "__main__":
    key = jax.random.PRNGKey(0)
    ks = jax.random.split(key, 11)

    B, C, H, W = 2, 64, 16, 16       # C must be a multiple of 32 for GroupNorm(32, C)
    scale = 4                        # pooled sequence length = (H//4)*(W//4) = 16
    C3 = 3 * C

    x = jax.random.normal(ks[0], (B, C, H, W), jnp.float32)

    def uinit(k, shape, fan_in):
        bound = 1.0 / (fan_in ** 0.5)
        return jax.random.uniform(k, shape, jnp.float32, -bound, bound)

    params = {
        "gn_weight": 1.0 + 0.1 * jax.random.normal(ks[1], (C,), jnp.float32),
        "gn_bias": 0.1 * jax.random.normal(ks[2], (C,), jnp.float32),
        "qkv_weight": uinit(ks[3], (C3, C, 1), C),
        "qkv_bias": uinit(ks[4], (C3,), C),
        "in_proj_weight": uinit(ks[5], (C3, C), C),
        "in_proj_bias": uinit(ks[6], (C3,), C),
        "out_proj_weight": uinit(ks[7], (C, C), C),
        "out_proj_bias": uinit(ks[8], (C,), C),
        "out_weight": uinit(ks[9], (C, C, 1), C),
        "out_bias": uinit(ks[10], (C,), C),
    }

    run = jax.jit(lambda x_, p_: pooled_attention_block(x_, p_, scale))
    out = jax.block_until_ready(run(x, params))

    ref = reference(x, params, scale)
    assert out.shape == (B, C, H, W), out.shape
    max_err = float(jnp.abs(out - ref).max())
    assert jnp.allclose(out, ref, atol=1e-3, rtol=1e-3), max_err
    print("KERNEL_OK")
</pallas_src>

<mosaic_0001>
module attributes {stable_mosaic.version = 11 : i64} {
  func.func @kernel(%arg0: i32, %arg1: memref<1x64x256xf32, #tpu.memory_space<vmem>>, %arg2: memref<256x16xf32, #tpu.memory_space<vmem>>, %arg3: memref<16x256xf32, #tpu.memory_space<vmem>>, %arg4: memref<64x64xf32, #tpu.memory_space<vmem>>, %arg5: memref<64x1xf32, #tpu.memory_space<vmem>>, %arg6: memref<64x1xf32, #tpu.memory_space<vmem>>, %arg7: memref<192x64xf32, #tpu.memory_space<vmem>>, %arg8: memref<192x1xf32, #tpu.memory_space<vmem>>, %arg9: memref<192x192xf32, #tpu.memory_space<vmem>>, %arg10: memref<192x1xf32, #tpu.memory_space<vmem>>, %arg11: memref<64x64xf32, #tpu.memory_space<vmem>>, %arg12: memref<64x1xf32, #tpu.memory_space<vmem>>, %arg13: memref<64x64xf32, #tpu.memory_space<vmem>>, %arg14: memref<64x1xf32, #tpu.memory_space<vmem>>, %arg15: memref<1x64x256xf32, #tpu.memory_space<vmem>>) attributes {dimension_semantics = [#tpu.dimension_semantics<parallel>], iteration_bounds = array<i64: 2>, scalar_prefetch = 0 : i64, scratch_operands = 0 : i64, tpu.core_type = #tpu.core_type<tc>, window_params = [{transform_indices = @transform_0, window_bounds = array<i64: 1, 64, 256>}, {pipeline_mode = #tpu.pipeline_mode<synchronous>, transform_indices = @transform_1, window_bounds = array<i64: 256, 16>}, {pipeline_mode = #tpu.pipeline_mode<synchronous>, transform_indices = @transform_2, window_bounds = array<i64: 16, 256>}, {pipeline_mode = #tpu.pipeline_mode<synchronous>, transform_indices = @transform_3, window_bounds = array<i64: 64, 64>}, {pipeline_mode = #tpu.pipeline_mode<synchronous>, transform_indices = @transform_4, window_bounds = array<i64: 64, 1>}, {pipeline_mode = #tpu.pipeline_mode<synchronous>, transform_indices = @transform_5, window_bounds = array<i64: 64, 1>}, {pipeline_mode = #tpu.pipeline_mode<synchronous>, transform_indices = @transform_6, window_bounds = array<i64: 192, 64>}, {pipeline_mode = #tpu.pipeline_mode<synchronous>, transform_indices = @transform_7, window_bounds = array<i64: 192, 1>}, {pipeline_mode = #tpu.pipeline_mode<synchronous>, transform_indices = @transform_8, window_bounds = array<i64: 192, 192>}, {pipeline_mode = #tpu.pipeline_mode<synchronous>, transform_indices = @transform_9, window_bounds = array<i64: 192, 1>}, {pipeline_mode = #tpu.pipeline_mode<synchronous>, transform_indices = @transform_10, window_bounds = array<i64: 64, 64>}, {pipeline_mode = #tpu.pipeline_mode<synchronous>, transform_indices = @transform_11, window_bounds = array<i64: 64, 1>}, {pipeline_mode = #tpu.pipeline_mode<synchronous>, transform_indices = @transform_12, window_bounds = array<i64: 64, 64>}, {pipeline_mode = #tpu.pipeline_mode<synchronous>, transform_indices = @transform_13, window_bounds = array<i64: 64, 1>}, {transform_indices = @transform_14, window_bounds = array<i64: 1, 64, 256>}]} {
    %c0 = arith.constant 0 : index
    %c0_0 = arith.constant 0 : index
    %c0_1 = arith.constant 0 : index
    %0 = vector.load %arg1[%c0, %c0_0, %c0_1] : memref<1x64x256xf32, #tpu.memory_space<vmem>>, vector<1x64x256xf32>
    %1 = vector.shape_cast %0 : vector<1x64x256xf32> to vector<64x256xf32>
    %c0_2 = arith.constant 0 : index
    %c0_3 = arith.constant 0 : index
    %2 = vector.load %arg2[%c0_2, %c0_3] : memref<256x16xf32, #tpu.memory_space<vmem>>, vector<256x16xf32>
    %cst = arith.constant dense<0.000000e+00> : vector<64x16xf32>
    %3 = tpu.matmul %1, %2, %cst {dimension_numbers = #tpu.dot_dimension_numbers<[1], [0], [0], [1], [0, 0, 1, 1], [], []>} : vector<64x256xf32>, vector<256x16xf32>, vector<64x16xf32> -> vector<64x16xf32>
    %c0_4 = arith.constant 0 : index
    %c0_5 = arith.constant 0 : index
    %4 = vector.load %arg4[%c0_4, %c0_5] : memref<64x64xf32, #tpu.memory_space<vmem>>, vector<64x64xf32>
    %cst_6 = arith.constant dense<0.000000e+00> : vector<64x16xf32>
    %5 = tpu.matmul %4, %3, %cst_6 {dimension_numbers = #tpu.dot_dimension_numbers<[1], [0], [0], [1], [0, 0, 1, 1], [], []>} : vector<64x64xf32>, vector<64x16xf32>, vector<64x16xf32> -> vector<64x16xf32>
    %6 = arith.mulf %3, %3 : vector<64x16xf32>
    %cst_7 = arith.constant dense<0.000000e+00> : vector<64x16xf32>
    %7 = tpu.matmul %4, %6, %cst_7 {dimension_numbers = #tpu.dot_dimension_numbers<[1], [0], [0], [1], [0, 0, 1, 1], [], []>} : vector<64x64xf32>, vector<64x16xf32>, vector<64x16xf32> -> vector<64x16xf32>
    %cst_8 = arith.constant dense<0.000000e+00> : vector<64xf32>
    %8 = vector.multi_reduction <add>, %5, %cst_8 [1] : vector<64x16xf32> to vector<64xf32>
    %9 = vector.shape_cast %8 : vector<64xf32> to vector<64x1xf32>
    %cst_9 = arith.constant 6.250000e-02 : f32
    %10 = vector.broadcast %cst_9 : f32 to vector<64x1xf32>
    %11 = arith.mulf %9, %10 : vector<64x1xf32>
    %cst_10 = arith.constant dense<0.000000e+00> : vector<64xf32>
    %12 = vector.multi_reduction <add>, %7, %cst_10 [1] : vector<64x16xf32> to vector<64xf32>
    %13 = vector.shape_cast %12 : vector<64xf32> to vector<64x1xf32>
    %cst_11 = arith.constant 6.250000e-02 : f32
    %14 = vector.broadcast %cst_11 : f32 to vector<64x1xf32>
    %15 = arith.mulf %13, %14 : vector<64x1xf32>
    %16 = arith.mulf %11, %11 : vector<64x1xf32>
    %17 = arith.subf %15, %16 : vector<64x1xf32>
    %18 = vector.broadcast %11 : vector<64x1xf32> to vector<64x16xf32>
    %19 = arith.subf %3, %18 : vector<64x16xf32>
    %cst_12 = arith.constant 9.99999974E-6 : f32
    %20 = vector.broadcast %cst_12 : f32 to vector<64x1xf32>
    %21 = arith.addf %17, %20 : vector<64x1xf32>
    %22 = math.rsqrt %21 : vector<64x1xf32>
    %c0_13 = arith.constant 0 : index
    %c0_14 = arith.constant 0 : index
    %23 = vector.load %arg5[%c0_13, %c0_14] : memref<64x1xf32, #tpu.memory_space<vmem>>, vector<64x1xf32>
    %24 = arith.mulf %22, %23 : vector<64x1xf32>
    %25 = vector.broadcast %24 : vector<64x1xf32> to vector<64x16xf32>
    %26 = arith.mulf %19, %25 : vector<64x16xf32>
    %c0_15 = arith.constant 0 : index
    %c0_16 = arith.constant 0 : index
    %27 = vector.load %arg6[%c0_15, %c0_16] : memref<64x1xf32, #tpu.memory_space<vmem>>, vector<64x1xf32>
    %28 = vector.broadcast %27 : vector<64x1xf32> to vector<64x16xf32>
    %29 = arith.addf %26, %28 : vector<64x16xf32>
    %c0_17 = arith.constant 0 : index
    %c0_18 = arith.constant 0 : index
    %30 = vector.load %arg7[%c0_17, %c0_18] : memref<192x64xf32, #tpu.memory_space<vmem>>, vector<192x64xf32>
    %cst_19 = arith.constant dense<0.000000e+00> : vector<192x16xf32>
    %31 = tpu.matmul %30, %29, %cst_19 {dimension_numbers = #tpu.dot_dimension_numbers<[1], [0], [0], [1], [0, 0, 1, 1], [], []>} : vector<192x64xf32>, vector<64x16xf32>, vector<192x16xf32> -> vector<192x16xf32>
    %c0_20 = arith.constant 0 : index
    %c0_21 = arith.constant 0 : index
    %32 = vector.load %arg8[%c0_20, %c0_21] : memref<192x1xf32, #tpu.memory_space<vmem>>, vector<192x1xf32>
    %33 = vector.broadcast %32 : vector<192x1xf32> to vector<192x16xf32>
    %34 = arith.addf %31, %33 : vector<192x16xf32>
    %c0_22 = arith.constant 0 : index
    %c0_23 = arith.constant 0 : index
    %35 = vector.load %arg9[%c0_22, %c0_23] : memref<192x192xf32, #tpu.memory_space<vmem>>, vector<192x192xf32>
    %cst_24 = arith.constant dense<0.000000e+00> : vector<192x16xf32>
    %36 = tpu.matmul %35, %34, %cst_24 {dimension_numbers = #tpu.dot_dimension_numbers<[1], [0], [0], [1], [0, 0, 1, 1], [], []>} : vector<192x192xf32>, vector<192x16xf32>, vector<192x16xf32> -> vector<192x16xf32>
    %c0_25 = arith.constant 0 : index
    %c0_26 = arith.constant 0 : index
    %37 = vector.load %arg10[%c0_25, %c0_26] : memref<192x1xf32, #tpu.memory_space<vmem>>, vector<192x1xf32>
    %38 = vector.broadcast %37 : vector<192x1xf32> to vector<192x16xf32>
    %39 = arith.addf %36, %38 : vector<192x16xf32>
    %40 = vector.extract_strided_slice %39 {offsets = [0, 0], sizes = [64, 16], strides = [1, 1]} : vector<192x16xf32> to vector<64x16xf32>
    %41 = vector.extract_strided_slice %39 {offsets = [64, 0], sizes = [64, 16], strides = [1, 1]} : vector<192x16xf32> to vector<64x16xf32>
    %42 = vector.extract_strided_slice %39 {offsets = [128, 0], sizes = [64, 16], strides = [1, 1]} : vector<192x16xf32> to vector<64x16xf32>
    %43 = tpu.transpose %40, [1, 0] : vector<64x16xf32> -> vector<16x64xf32>
    %cst_27 = arith.constant dense<0.000000e+00> : vector<16x16xf32>
    %44 = tpu.matmul %43, %41, %cst_27 {dimension_numbers = #tpu.dot_dimension_numbers<[1], [0], [0], [1], [0, 0, 1, 1], [], []>} : vector<16x64xf32>, vector<64x16xf32>, vector<16x16xf32> -> vector<16x16xf32>
    %cst_28 = arith.constant 1.250000e-01 : f32
    %45 = vector.broadcast %cst_28 : f32 to vector<16x16xf32>
    %46 = arith.mulf %44, %45 : vector<16x16xf32>
    %cst_29 = arith.constant dense<0xFF800000> : vector<16xf32>
    %47 = vector.multi_reduction <maximumf>, %46, %cst_29 [1] : vector<16x16xf32> to vector<16xf32>
    %48 = vector.shape_cast %47 : vector<16xf32> to vector<16x1xf32>
    %49 = vector.broadcast %48 : vector<16x1xf32> to vector<16x16xf32>
    %50 = arith.subf %46, %49 : vector<16x16xf32>
    %51 = math.exp %50 : vector<16x16xf32>
    %cst_30 = arith.constant dense<0.000000e+00> : vector<16xf32>
    %52 = vector.multi_reduction <add>, %51, %cst_30 [1] : vector<16x16xf32> to vector<16xf32>
    %53 = vector.shape_cast %52 : vector<16xf32> to vector<16x1xf32>
    %54 = vector.broadcast %53 : vector<16x1xf32> to vector<16x16xf32>
    %55 = arith.divf %51, %54 : vector<16x16xf32>
    %56 = tpu.transpose %55, [1, 0] : vector<16x16xf32> -> vector<16x16xf32>
    %cst_31 = arith.constant dense<0.000000e+00> : vector<64x16xf32>
    %57 = tpu.matmul %42, %56, %cst_31 {dimension_numbers = #tpu.dot_dimension_numbers<[1], [0], [0], [1], [0, 0, 1, 1], [], []>} : vector<64x16xf32>, vector<16x16xf32>, vector<64x16xf32> -> vector<64x16xf32>
    %c0_32 = arith.constant 0 : index
    %c0_33 = arith.constant 0 : index
    %58 = vector.load %arg11[%c0_32, %c0_33] : memref<64x64xf32, #tpu.memory_space<vmem>>, vector<64x64xf32>
    %cst_34 = arith.constant dense<0.000000e+00> : vector<64x16xf32>
    %59 = tpu.matmul %58, %57, %cst_34 {dimension_numbers = #tpu.dot_dimension_numbers<[1], [0], [0], [1], [0, 0, 1, 1], [], []>} : vector<64x64xf32>, vector<64x16xf32>, vector<64x16xf32> -> vector<64x16xf32>
    %c0_35 = arith.constant 0 : index
    %c0_36 = arith.constant 0 : index
    %60 = vector.load %arg12[%c0_35, %c0_36] : memref<64x1xf32, #tpu.memory_space<vmem>>, vector<64x1xf32>
    %61 = vector.broadcast %60 : vector<64x1xf32> to vector<64x16xf32>
    %62 = arith.addf %59, %61 : vector<64x16xf32>
    %c0_37 = arith.constant 0 : index
    %c0_38 = arith.constant 0 : index
    %63 = vector.load %arg13[%c0_37, %c0_38] : memref<64x64xf32, #tpu.memory_space<vmem>>, vector<64x64xf32>
    %cst_39 = arith.constant dense<0.000000e+00> : vector<64x16xf32>
    %64 = tpu.matmul %63, %62, %cst_39 {dimension_numbers = #tpu.dot_dimension_numbers<[1], [0], [0], [1], [0, 0, 1, 1], [], []>} : vector<64x64xf32>, vector<64x16xf32>, vector<64x16xf32> -> vector<64x16xf32>
    %c0_40 = arith.constant 0 : index
    %c0_41 = arith.constant 0 : index
    %65 = vector.load %arg14[%c0_40, %c0_41] : memref<64x1xf32, #tpu.memory_space<vmem>>, vector<64x1xf32>
    %66 = vector.broadcast %65 : vector<64x1xf32> to vector<64x16xf32>
    %67 = arith.addf %64, %66 : vector<64x16xf32>
    %c0_42 = arith.constant 0 : index
    %c0_43 = arith.constant 0 : index
    %68 = vector.load %arg3[%c0_42, %c0_43] : memref<16x256xf32, #tpu.memory_space<vmem>>, vector<16x256xf32>
    %cst_44 = arith.constant dense<0.000000e+00> : vector<64x256xf32>
    %69 = tpu.matmul %67, %68, %cst_44 {dimension_numbers = #tpu.dot_dimension_numbers<[1], [0], [0], [1], [0, 0, 1, 1], [], []>} : vector<64x16xf32>, vector<16x256xf32>, vector<64x256xf32> -> vector<64x256xf32>
    %70 = arith.addf %1, %69 : vector<64x256xf32>
    %c0_45 = arith.constant 0 : index
    %c0_46 = arith.constant 0 : index
    %c0_47 = arith.constant 0 : index
    %71 = vector.load %arg15[%c0_45, %c0_46, %c0_47] : memref<1x64x256xf32, #tpu.memory_space<vmem>>, vector<1x64x256xf32>
    %72 = vector.shape_cast %71 : vector<1x64x256xf32> to vector<64x256xf32>
    %73 = vector.shape_cast %70 : vector<64x256xf32> to vector<1x64x256xf32>
    tpu.vector_store %arg15[%c0_45, %c0_46, %c0_47], %73 {strides = array<i32>} : memref<1x64x256xf32, #tpu.memory_space<vmem>>, vector<1x64x256xf32>,
    return
  }
  func.func @transform_0(%arg0: i32) -> (i32, i32, i32) {
    %c0_i32 = arith.constant 0 : i32
    %c0_i32_0 = arith.constant 0 : i32
    %c0_i32_1 = arith.constant 0 : i32
    return %arg0, %c0_i32, %c0_i32_0 : i32, i32, i32
  }
  func.func @transform_1(%arg0: i32) -> (i32, i32) {
    %c0_i32 = arith.constant 0 : i32
    %c0_i32_0 = arith.constant 0 : i32
    %c0_i32_1 = arith.constant 0 : i32
    return %c0_i32, %c0_i32_0 : i32, i32
  }
  func.func @transform_2(%arg0: i32) -> (i32, i32) {
    %c0_i32 = arith.constant 0 : i32
    %c0_i32_0 = arith.constant 0 : i32
    %c0_i32_1 = arith.constant 0 : i32
    return %c0_i32, %c0_i32_0 : i32, i32
  }
  func.func @transform_3(%arg0: i32) -> (i32, i32) {
    %c0_i32 = arith.constant 0 : i32
    %c0_i32_0 = arith.constant 0 : i32
    %c0_i32_1 = arith.constant 0 : i32
    return %c0_i32, %c0_i32_0 : i32, i32
  }
  func.func @transform_4(%arg0: i32) -> (i32, i32) {
    %c0_i32 = arith.constant 0 : i32
    %c0_i32_0 = arith.constant 0 : i32
    %c0_i32_1 = arith.constant 0 : i32
    return %c0_i32, %c0_i32_0 : i32, i32
  }
  func.func @transform_5(%arg0: i32) -> (i32, i32) {
    %c0_i32 = arith.constant 0 : i32
    %c0_i32_0 = arith.constant 0 : i32
    %c0_i32_1 = arith.constant 0 : i32
    return %c0_i32, %c0_i32_0 : i32, i32
  }
  func.func @transform_6(%arg0: i32) -> (i32, i32) {
    %c0_i32 = arith.constant 0 : i32
    %c0_i32_0 = arith.constant 0 : i32
    %c0_i32_1 = arith.constant 0 : i32
    return %c0_i32, %c0_i32_0 : i32, i32
  }
  func.func @transform_7(%arg0: i32) -> (i32, i32) {
    %c0_i32 = arith.constant 0 : i32
    %c0_i32_0 = arith.constant 0 : i32
    %c0_i32_1 = arith.constant 0 : i32
    return %c0_i32, %c0_i32_0 : i32, i32
  }
  func.func @transform_8(%arg0: i32) -> (i32, i32) {
    %c0_i32 = arith.constant 0 : i32
    %c0_i32_0 = arith.constant 0 : i32
    %c0_i32_1 = arith.constant 0 : i32
    return %c0_i32, %c0_i32_0 : i32, i32
  }
  func.func @transform_9(%arg0: i32) -> (i32, i32) {
    %c0_i32 = arith.constant 0 : i32
    %c0_i32_0 = arith.constant 0 : i32
    %c0_i32_1 = arith.constant 0 : i32
    return %c0_i32, %c0_i32_0 : i32, i32
  }
  func.func @transform_10(%arg0: i32) -> (i32, i32) {
    %c0_i32 = arith.constant 0 : i32
    %c0_i32_0 = arith.constant 0 : i32
    %c0_i32_1 = arith.constant 0 : i32
    return %c0_i32, %c0_i32_0 : i32, i32
  }
  func.func @transform_11(%arg0: i32) -> (i32, i32) {
    %c0_i32 = arith.constant 0 : i32
    %c0_i32_0 = arith.constant 0 : i32
    %c0_i32_1 = arith.constant 0 : i32
    return %c0_i32, %c0_i32_0 : i32, i32
  }
  func.func @transform_12(%arg0: i32) -> (i32, i32) {
    %c0_i32 = arith.constant 0 : i32
    %c0_i32_0 = arith.constant 0 : i32
    %c0_i32_1 = arith.constant 0 : i32
    return %c0_i32, %c0_i32_0 : i32, i32
  }
  func.func @transform_13(%arg0: i32) -> (i32, i32) {
    %c0_i32 = arith.constant 0 : i32
    %c0_i32_0 = arith.constant 0 : i32
    %c0_i32_1 = arith.constant 0 : i32
    return %c0_i32, %c0_i32_0 : i32, i32
  }
  func.func @transform_14(%arg0: i32) -> (i32, i32, i32) {
    %c0_i32 = arith.constant 0 : i32
    %c0_i32_0 = arith.constant 0 : i32
    %c0_i32_1 = arith.constant 0 : i32
    return %arg0, %c0_i32, %c0_i32_0 : i32, i32, i32
  }
}

</mosaic_0001>

<llo_original>
// kernel: _lambda_.1
$region0: #{_lambda_.1}
  #allocation0 [shape = 'u32[]', space=smem, size = 0x4, offset = 0x4, fixed_abs, tag = 'smem constant byte address 0x4 - core index']
  #allocation1 [shape = 'u32[144,128]{1,0:T(1,128)}', space=vmem, size = 0x12000, scoped, tag = 'internal scratch']
  %s0 = inlined_call_operand.vmem [shape: f32[2,64,256], index: 0, kind: input, shape index: {}]
  %s1 = inlined_call_operand.vmem [shape: f32[256,16], index: 1, kind: input, shape index: {}]
  %s2 = inlined_call_operand.vmem [shape: f32[16,256], index: 2, kind: input, shape index: {}]
  %s3 = inlined_call_operand.vmem [shape: f32[64,64], index: 3, kind: input, shape index: {}]
  %s4 = inlined_call_operand.vmem [shape: f32[64,1], index: 4, kind: input, shape index: {}]
  %s5 = inlined_call_operand.vmem [shape: f32[64,1], index: 5, kind: input, shape index: {}]
  %s6 = inlined_call_operand.vmem [shape: f32[192,64], index: 6, kind: input, shape index: {}]
  %s7 = inlined_call_operand.vmem [shape: f32[192,1], index: 7, kind: input, shape index: {}]
  %s8 = inlined_call_operand.vmem [shape: f32[192,192], index: 8, kind: input, shape index: {}]
  %s9 = inlined_call_operand.vmem [shape: f32[192,1], index: 9, kind: input, shape index: {}]
  %s10 = inlined_call_operand.vmem [shape: f32[64,64], index: 10, kind: input, shape index: {}]
  %s11 = inlined_call_operand.vmem [shape: f32[64,1], index: 11, kind: input, shape index: {}]
  %s12 = inlined_call_operand.vmem [shape: f32[64,64], index: 12, kind: input, shape index: {}]
  %s13 = inlined_call_operand.vmem [shape: f32[64,1], index: 13, kind: input, shape index: {}]
  %s14 = inlined_call_operand.vmem [shape: f32[2,64,256], index: 14, kind: output, shape index: {}]
  %s15 = sld [smem:[#allocation0]]
  $region89: #{_lambda_.1} parent=0
    _
  %s17 = ssub.s32 1, %s15
  %s18 = scalar_select 0, %s17, %s15
  loop: start=0, step=1, limit=4
  $region2: #{_lambda_.1} parent=0 // loop_pre_header
    _
  $region3: #{_lambda_.1} parent=0 // loop_header
    %s20 = sphi 0, %s24
    %p21 = scmp.ge.s32.totalorder %s20, 4
    %s30 = sphi 0, %s32
    %s33 = sphi 0, %s30
    %s34 = sphi 0, %s33
    %s50 = sphi 0, %s34
    %s54 = sphi 0, %s54
    %s56 = sphi 0, %s54
    %s57 = sphi 0, %s56
    %s71 = sphi 0, %s57
    %s75 = sphi 0, %s75
    %s77 = sphi 0, %s75
    %s78 = sphi 0, %s77
    %s92 = sphi 0, %s78
    %s96 = sphi 0, %s96
    %s98 = sphi 0, %s96
    %s99 = sphi 0, %s98
    %s113 = sphi 0, %s99
    %s117 = sphi 0, %s117
    %s119 = sphi 0, %s117
    %s120 = sphi 0, %s119
    %s134 = sphi 0, %s120
    %s138 = sphi 0, %s138
    %s140 = sphi 0, %s138
    %s141 = sphi 0, %s140
    %s155 = sphi 0, %s141
    %s159 = sphi 0, %s159
    %s161 = sphi 0, %s159
    %s162 = sphi 0, %s161
    %s176 = sphi 0, %s162
    %s180 = sphi 0, %s180
    %s182 = sphi 0, %s180
    %s183 = sphi 0, %s182
    %s197 = sphi 0, %s183
    %s201 = sphi 0, %s201
    %s203 = sphi 0, %s201
    %s204 = sphi 0, %s203
    %s218 = sphi 0, %s204
    %s222 = sphi 0, %s222
    %s224 = sphi 0, %s222
    %s225 = sphi 0, %s224
    %s239 = sphi 0, %s225
    %s243 = sphi 0, %s243
    %s245 = sphi 0, %s243
    %s246 = sphi 0, %s245
    %s260 = sphi 0, %s246
    %s264 = sphi 0, %s264
    %s266 = sphi 0, %s264
    %s267 = sphi 0, %s266
    %s281 = sphi 0, %s267
    %s285 = sphi 0, %s285
    %s287 = sphi 0, %s285
    %s288 = sphi 0, %s287
    %s302 = sphi 0, %s288
    %s306 = sphi 0, %s306
    %s308 = sphi 0, %s306
    %s309 = sphi 0, %s308
    %s323 = sphi 0, %s309
    %s329 = sphi 0, %s331
    %s332 = sphi 0, %s329
    %s333 = sphi 0, %s332
    %s349 = sphi 0, %s333
  $region4: #{_lambda_.1} parent=0 // loop_header_branch
    %23 = sbr.rel (%p21) target = $region8
  $region5: #{_lambda_.1} parent=0 // loop_body
    %s25 = ssub.s32 %s20, 1
    %s26 = ssub.s32 %s20, 2
    %s27 = sadd.s32 %s20, 1
    %s28 = ssub.s32 %s20, %s27
    %p29 = scmp.eq.s32.totalorder %s28, 0
    %s31 = sadd.s32 %s30, 1
    %s32 = scalar_select %p29, %s30, %s31
    %p35 = pneg %p29
    %p36 = scmp.eq.s32.totalorder %s20, 1
    %p37 = por %p35, %p36
    %p38 = scmp.ne.s32.totalorder %s30, %s33
    %p39 = scmp.eq.s32.totalorder %s20, 0
    %p40 = por %p38, %p39
    %p41 = scmp.ne.s32.totalorder %s30, %s33
    %p42 = scmp.eq.s32.totalorder %s25, 1
    %p43 = por %p41, %p42
    %p44 = scmp.ne.s32.totalorder %s33, %s34
    %p45 = scmp.eq.s32.totalorder %s25, 0
    %p46 = por %p44, %p45
    %p47 = scmp.ne.s32.totalorder %s33, %s34
    %p48 = scmp.eq.s32.totalorder %s26, 1
    %p49 = por %p47, %p48
    %p51 = scmp.ne.s32.totalorder %s34, %s50
    %p52 = scmp.eq.s32.totalorder %s26, 0
    %p53 = por %p51, %p52
    %s55 = sadd.s32 %s54, 1
    %p58 = scmp.eq.s32.totalorder %s20, 1
    %p59 = scmp.ne.s32.totalorder %s54, %s56
    %p60 = scmp.eq.s32.totalorder %s20, 0
    %p61 = por %p59, %p60
    %p62 = scmp.ne.s32.totalorder %s54, %s56
    %p63 = scmp.eq.s32.totalorder %s25, 1
    %p64 = por %p62, %p63
    %p65 = scmp.ne.s32.totalorder %s56, %s57
    %p66 = scmp.eq.s32.totalorder %s25, 0
    %p67 = por %p65, %p66
    %p68 = scmp.ne.s32.totalorder %s56, %s57
    %p69 = scmp.eq.s32.totalorder %s26, 1
    %p70 = por %p68, %p69
    %p72 = scmp.ne.s32.totalorder %s57, %s71
    %p73 = scmp.eq.s32.totalorder %s26, 0
    %p74 = por %p72, %p73
    %s76 = sadd.s32 %s75, 1
    %p79 = scmp.eq.s32.totalorder %s20, 1
    %p80 = scmp.ne.s32.totalorder %s75, %s77
    %p81 = scmp.eq.s32.totalorder %s20, 0
    %p82 = por %p80, %p81
    %p83 = scmp.ne.s32.totalorder %s75, %s77
    %p84 = scmp.eq.s32.totalorder %s25, 1
    %p85 = por %p83, %p84
    %p86 = scmp.ne.s32.totalorder %s77, %s78
    %p87 = scmp.eq.s32.totalorder %s25, 0
    %p88 = por %p86, %p87
    %p89 = scmp.ne.s32.totalorder %s77, %s78
    %p90 = scmp.eq.s32.totalorder %s26, 1
    %p91 = por %p89, %p90
    %p93 = scmp.ne.s32.totalorder %s78, %s92
    %p94 = scmp.eq.s32.totalorder %s26, 0
    %p95 = por %p93, %p94
    %s97 = sadd.s32 %s96, 1
    %p100 = scmp.eq.s32.totalorder %s20, 1
    %p101 = scmp.ne.s32.totalorder %s96, %s98
    %p102 = scmp.eq.s32.totalorder %s20, 0
    %p103 = por %p101, %p102
    %p104 = scmp.ne.s32.totalorder %s96, %s98
    %p105 = scmp.eq.s32.totalorder %s25, 1
    %p106 = por %p104, %p105
    %p107 = scmp.ne.s32.totalorder %s98, %s99
    %p108 = scmp.eq.s32.totalorder %s25, 0
    %p109 = por %p107, %p108
    %p110 = scmp.ne.s32.totalorder %s98, %s99
    %p111 = scmp.eq.s32.totalorder %s26, 1
    %p112 = por %p110, %p111
    %p114 = scmp.ne.s32.totalorder %s99, %s113
    %p115 = scmp.eq.s32.totalorder %s26, 0
    %p116 = por %p114, %p115
    %s118 = sadd.s32 %s117, 1
    %p121 = scmp.eq.s32.totalorder %s20, 1
    %p122 = scmp.ne.s32.totalorder %s117, %s119
    %p123 = scmp.eq.s32.totalorder %s20, 0
    %p124 = por %p122, %p123
    %p125 = scmp.ne.s32.totalorder %s117, %s119
    %p126 = scmp.eq.s32.totalorder %s25, 1
    %p127 = por %p125, %p126
    %p128 = scmp.ne.s32.totalorder %s119, %s120
    %p129 = scmp.eq.s32.totalorder %s25, 0
    %p130 = por %p128, %p129
    %p131 = scmp.ne.s32.totalorder %s119, %s120
    %p132 = scmp.eq.s32.totalorder %s26, 1
    %p133 = por %p131, %p132
    %p135 = scmp.ne.s32.totalorder %s120, %s134
    %p136 = scmp.eq.s32.totalorder %s26, 0
    %p137 = por %p135, %p136
    %s139 = sadd.s32 %s138, 1
    %p142 = scmp.eq.s32.totalorder %s20, 1
    %p143 = scmp.ne.s32.totalorder %s138, %s140
    %p144 = scmp.eq.s32.totalorder %s20, 0
    %p145 = por %p143, %p144
    %p146 = scmp.ne.s32.totalorder %s138, %s140
    %p147 = scmp.eq.s32.totalorder %s25, 1
    %p148 = por %p146, %p147
    %p149 = scmp.ne.s32.totalorder %s140, %s141
    %p150 = scmp.eq.s32.totalorder %s25, 0
    %p151 = por %p149, %p150
    %p152 = scmp.ne.s32.totalorder %s140, %s141
    %p153 = scmp.eq.s32.totalorder %s26, 1
    %p154 = por %p152, %p153
    %p156 = scmp.ne.s32.totalorder %s141, %s155
    %p157 = scmp.eq.s32.totalorder %s26, 0
    %p158 = por %p156, %p157
    %s160 = sadd.s32 %s159, 1
    %p163 = scmp.eq.s32.totalorder %s20, 1
    %p164 = scmp.ne.s32.totalorder %s159, %s161
    %p165 = scmp.eq.s32.totalorder %s20, 0
    %p166 = por %p164, %p165
    %p167 = scmp.ne.s32.totalorder %s159, %s161
    %p168 = scmp.eq.s32.totalorder %s25, 1
    %p169 = por %p167, %p168
    %p170 = scmp.ne.s32.totalorder %s161, %s162
    %p171 = scmp.eq.s32.totalorder %s25, 0
    %p172 = por %p170, %p171
    %p173 = scmp.ne.s32.totalorder %s161, %s162
    %p174 = scmp.eq.s32.totalorder %s26, 1
    %p175 = por %p173, %p174
    %p177 = scmp.ne.s32.totalorder %s162, %s176
    %p178 = scmp.eq.s32.totalorder %s26, 0
    %p179 = por %p177, %p178
    %s181 = sadd.s32 %s180, 1
    %p184 = scmp.eq.s32.totalorder %s20, 1
    %p185 = scmp.ne.s32.totalorder %s180, %s182
    %p186 = scmp.eq.s32.totalorder %s20, 0
    %p187 = por %p185, %p186
    %p188 = scmp.ne.s32.totalorder %s180, %s182
    %p189 = scmp.eq.s32.totalorder %s25, 1
    %p190 = por %p188, %p189
    %p191 = scmp.ne.s32.totalorder %s182, %s183
    %p192 = scmp.eq.s32.totalorder %s25, 0
    %p193 = por %p191, %p192
    %p194 = scmp.ne.s32.totalorder %s182, %s183
    %p195 = scmp.eq.s32.totalorder %s26, 1
    %p196 = por %p194, %p195
    %p198 = scmp.ne.s32.totalorder %s183, %s197
    %p199 = scmp.eq.s32.totalorder %s26, 0
    %p200 = por %p198, %p199
    %s202 = sadd.s32 %s201, 1
    %p205 = scmp.eq.s32.totalorder %s20, 1
    %p206 = scmp.ne.s32.totalorder %s201, %s203
    %p207 = scmp.eq.s32.totalorder %s20, 0
    %p208 = por %p206, %p207
    %p209 = scmp.ne.s32.totalorder %s201, %s203
    %p210 = scmp.eq.s32.totalorder %s25, 1
    %p211 = por %p209, %p210
    %p212 = scmp.ne.s32.totalorder %s203, %s204
    %p213 = scmp.eq.s32.totalorder %s25, 0
    %p214 = por %p212, %p213
    %p215 = scmp.ne.s32.totalorder %s203, %s204
    %p216 = scmp.eq.s32.totalorder %s26, 1
    %p217 = por %p215, %p216
    %p219 = scmp.ne.s32.totalorder %s204, %s218
    %p220 = scmp.eq.s32.totalorder %s26, 0
    %p221 = por %p219, %p220
    %s223 = sadd.s32 %s222, 1
    %p226 = scmp.eq.s32.totalorder %s20, 1
    %p227 = scmp.ne.s32.totalorder %s222, %s224
    %p228 = scmp.eq.s32.totalorder %s20, 0
    %p229 = por %p227, %p228
    %p230 = scmp.ne.s32.totalorder %s222, %s224
    %p231 = scmp.eq.s32.totalorder %s25, 1
    %p232 = por %p230, %p231
    %p233 = scmp.ne.s32.totalorder %s224, %s225
    %p234 = scmp.eq.s32.totalorder %s25, 0
    %p235 = por %p233, %p234
    %p236 = scmp.ne.s32.totalorder %s224, %s225
    %p237 = scmp.eq.s32.totalorder %s26, 1
    %p238 = por %p236, %p237
    %p240 = scmp.ne.s32.totalorder %s225, %s239
    %p241 = scmp.eq.s32.totalorder %s26, 0
    %p242 = por %p240, %p241
    %s244 = sadd.s32 %s243, 1
    %p247 = scmp.eq.s32.totalorder %s20, 1
    %p248 = scmp.ne.s32.totalorder %s243, %s245
    %p249 = scmp.eq.s32.totalorder %s20, 0
    %p250 = por %p248, %p249
    %p251 = scmp.ne.s32.totalorder %s243, %s245
    %p252 = scmp.eq.s32.totalorder %s25, 1
    %p253 = por %p251, %p252
    %p254 = scmp.ne.s32.totalorder %s245, %s246
    %p255 = scmp.eq.s32.totalorder %s25, 0
    %p256 = por %p254, %p255
    %p257 = scmp.ne.s32.totalorder %s245, %s246
    %p258 = scmp.eq.s32.totalorder %s26, 1
    %p259 = por %p257, %p258
    %p261 = scmp.ne.s32.totalorder %s246, %s260
    %p262 = scmp.eq.s32.totalorder %s26, 0
    %p263 = por %p261, %p262
    %s265 = sadd.s32 %s264, 1
    %p268 = scmp.eq.s32.totalorder %s20, 1
    %p269 = scmp.ne.s32.totalorder %s264, %s266
    %p270 = scmp.eq.s32.totalorder %s20, 0
    %p271 = por %p269, %p270
    %p272 = scmp.ne.s32.totalorder %s264, %s266
    %p273 = scmp.eq.s32.totalorder %s25, 1
    %p274 = por %p272, %p273
    %p275 = scmp.ne.s32.totalorder %s266, %s267
    %p276 = scmp.eq.s32.totalorder %s25, 0
    %p277 = por %p275, %p276
    %p278 = scmp.ne.s32.totalorder %s266, %s267
    %p279 = scmp.eq.s32.totalorder %s26, 1
    %p280 = por %p278, %p279
    %p282 = scmp.ne.s32.totalorder %s267, %s281
    %p283 = scmp.eq.s32.totalorder %s26, 0
    %p284 = por %p282, %p283
    %s286 = sadd.s32 %s285, 1
    %p289 = scmp.eq.s32.totalorder %s20, 1
    %p290 = scmp.ne.s32.totalorder %s285, %s287
    %p291 = scmp.eq.s32.totalorder %s20, 0
    %p292 = por %p290, %p291
    %p293 = scmp.ne.s32.totalorder %s285, %s287
    %p294 = scmp.eq.s32.totalorder %s25, 1
    %p295 = por %p293, %p294
    %p296 = scmp.ne.s32.totalorder %s287, %s288
    %p297 = scmp.eq.s32.totalorder %s25, 0
    %p298 = por %p296, %p297
    %p299 = scmp.ne.s32.totalorder %s287, %s288
    %p300 = scmp.eq.s32.totalorder %s26, 1
    %p301 = por %p299, %p300
    %p303 = scmp.ne.s32.totalorder %s288, %s302
    %p304 = scmp.eq.s32.totalorder %s26, 0
    %p305 = por %p303, %p304
    %s307 = sadd.s32 %s306, 1
    %p310 = scmp.eq.s32.totalorder %s20, 1
    %p311 = scmp.ne.s32.totalorder %s306, %s308
    %p312 = scmp.eq.s32.totalorder %s20, 0
    %p313 = por %p311, %p312
    %p314 = scmp.ne.s32.totalorder %s306, %s308
    %p315 = scmp.eq.s32.totalorder %s25, 1
    %p316 = por %p314, %p315
    %p317 = scmp.ne.s32.totalorder %s308, %s309
    %p318 = scmp.eq.s32.totalorder %s25, 0
    %p319 = por %p317, %p318
    %p320 = scmp.ne.s32.totalorder %s308, %s309
    %p321 = scmp.eq.s32.totalorder %s26, 1
    %p322 = por %p320, %p321
    %p324 = scmp.ne.s32.totalorder %s309, %s323
    %p325 = scmp.eq.s32.totalorder %s26, 0
    %p326 = por %p324, %p325
    %s327 = ssub.s32 %s20, %s27
    %p328 = scmp.eq.s32.totalorder %s327, 0
    %s330 = sadd.s32 %s329, 1
    %s331 = scalar_select %p328, %s329, %s330
    %p334 = pneg %p328
    %p335 = scmp.eq.s32.totalorder %s20, 1
    %p336 = por %p334, %p335
    %p337 = scmp.ne.s32.totalorder %s329, %s332
    %p338 = scmp.eq.s32.totalorder %s20, 0
    %p339 = por %p337, %p338
    %p340 = scmp.ne.s32.totalorder %s329, %s332
    %p341 = scmp.eq.s32.totalorder %s25, 1
    %p342 = por %p340, %p341
    %p343 = scmp.ne.s32.totalorder %s332, %s333
    %p344 = scmp.eq.s32.totalorder %s25, 0
    %p345 = por %p343, %p344
    %p346 = scmp.ne.s32.totalorder %s332, %s333
    %p347 = scmp.eq.s32.totalorder %s26, 1
    %p348 = por %p346, %p347
    %p350 = scmp.ne.s32.totalorder %s333, %s349
    %p351 = scmp.eq.s32.totalorder %s26, 0
    %p352 = por %p350, %p351
    %p353 = scmp.le.s32.totalorder 1, %s20
    %p354 = scmp.lt.s32.totalorder %s20, 3
    %p355 = pnand %p353, %p354
    %p356 = pneg %p355
    // Predicated region
    $region9: #{_lambda_.1} parent=5 // pred_check
      _
    $region10: #{_lambda_.1} parent=5 // pred_check_branch
      %358 = sbr.rel (%p355) target = $region12
    $region11: #{_lambda_.1} parent=5 // pred_region
      %s359 = ssub.s32 %s20, 1
      // Predicated region
      $region13: #{_lambda_.1} parent=11 // pred_check
        %p360 = pneg %p67
      $region14: #{_lambda_.1} parent=11 // pred_check_branch
        %362 = sbr.rel (%p360) target = $region16
      $region15: #{_lambda_.1} parent=11 // pred_region
        _
      $region16: #{_lambda_.1} parent=11 // pred_fallthru
        _
      // Predicated region
      $region17: #{_lambda_.1} parent=11 // pred_check
        %p363 = pneg %p88
      $region18: #{_lambda_.1} parent=11 // pred_check_branch
        %365 = sbr.rel (%p363) target = $region20
      $region19: #{_lambda_.1} parent=11 // pred_region
        _
      $region20: #{_lambda_.1} parent=11 // pred_fallthru
        _
      // Predicated region
      $region21: #{_lambda_.1} parent=11 // pred_check
        %p366 = pneg %p109
      $region22: #{_lambda_.1} parent=11 // pred_check_branch
        %368 = sbr.rel (%p366) target = $region24
      $region23: #{_lambda_.1} parent=11 // pred_region
        _
      $region24: #{_lambda_.1} parent=11 // pred_fallthru
        _
      // Predicated region
      $region25: #{_lambda_.1} parent=11 // pred_check
        %p369 = pneg %p130
      $region26: #{_lambda_.1} parent=11 // pred_check_branch
        %371 = sbr.rel (%p369) target = $region28
      $region27: #{_lambda_.1} parent=11 // pred_region
        _
      $region28: #{_lambda_.1} parent=11 // pred_fallthru
        _
      // Predicated region
      $region29: #{_lambda_.1} parent=11 // pred_check
        %p372 = pneg %p151
      $region30: #{_lambda_.1} parent=11 // pred_check_branch
        %374 = sbr.rel (%p372) target = $region32
      $region31: #{_lambda_.1} parent=11 // pred_region
        _
      $region32: #{_lambda_.1} parent=11 // pred_fallthru
        _
      // Predicated region
      $region33: #{_lambda_.1} parent=11 // pred_check
        %p375 = pneg %p172
      $region34: #{_lambda_.1} parent=11 // pred_check_branch
        %377 = sbr.rel (%p375) target = $region36
      $region35: #{_lambda_.1} parent=11 // pred_region
        _
      $region36: #{_lambda_.1} parent=11 // pred_fallthru
        _
      // Predicated region
      $region37: #{_lambda_.1} parent=11 // pred_check
        %p378 = pneg %p193
      $region38: #{_lambda_.1} parent=11 // pred_check_branch
        %380 = sbr.rel (%p378) target = $region40
      $region39: #{_lambda_.1} parent=11 // pred_region
        _
      $region40: #{_lambda_.1} parent=11 // pred_fallthru
        _
      // Predicated region
      $region41: #{_lambda_.1} parent=11 // pred_check
        %p381 = pneg %p214
      $region42: #{_lambda_.1} parent=11 // pred_check_branch
        %383 = sbr.rel (%p381) target = $region44
      $region43: #{_lambda_.1} parent=11 // pred_region
        _
      $region44: #{_lambda_.1} parent=11 // pred_fallthru
        _
      // Predicated region
      $region45: #{_lambda_.1} parent=11 // pred_check
        %p384 = pneg %p235
      $region46: #{_lambda_.1} parent=11 // pred_check_branch
        %386 = sbr.rel (%p384) target = $region48
      $region47: #{_lambda_.1} parent=11 // pred_region
        _
      $region48: #{_lambda_.1} parent=11 // pred_fallthru
        _
      // Predicated region
      $region49: #{_lambda_.1} parent=11 // pred_check
        %p387 = pneg %p256
      $region50: #{_lambda_.1} parent=11 // pred_check_branch
        %389 = sbr.rel (%p387) target = $region52
      $region51: #{_lambda_.1} parent=11 // pred_region
        _
      $region52: #{_lambda_.1} parent=11 // pred_fallthru
        _
      // Predicated region
      $region53: #{_lambda_.1} parent=11 // pred_check
        %p390 = pneg %p277
      $region54: #{_lambda_.1} parent=11 // pred_check_branch
        %392 = sbr.rel (%p390) target = $region56
      $region55: #{_lambda_.1} parent=11 // pred_region
        _
      $region56: #{_lambda_.1} parent=11 // pred_fallthru
        _
      // Predicated region
      $region57: #{_lambda_.1} parent=11 // pred_check
        %p393 = pneg %p298
      $region58: #{_lambda_.1} parent=11 // pred_check_branch
        %395 = sbr.rel (%p393) target = $region60
      $region59: #{_lambda_.1} parent=11 // pred_region
        _
      $region60: #{_lambda_.1} parent=11 // pred_fallthru
        _
      // Predicated region
      $region61: #{_lambda_.1} parent=11 // pred_check
        %p396 = pneg %p319
      $region62: #{_lambda_.1} parent=11 // pred_check_branch
        %398 = sbr.rel (%p396) target = $region64
      $region63: #{_lambda_.1} parent=11 // pred_region
        _
      $region64: #{_lambda_.1} parent=11 // pred_fallthru
        _
    $region12: #{_lambda_.1} parent=5 // pred_fallthru
      _
    %p399 = scmp.lt.s32.totalorder %s20, 2
    // Predicated region
    $region65: #{_lambda_.1} parent=5 // pred_check
      %p400 = pneg %p399
    $region66: #{_lambda_.1} parent=5 // pred_check_branch
      %402 = sbr.rel (%p400) target = $region68
    $region67: #{_lambda_.1} parent=5 // pred_region
      // Predicated region
      $region69: #{_lambda_.1} parent=67 // pred_check
        %p403 = pneg %p40
      $region70: #{_lambda_.1} parent=67 // pred_check_branch
        %405 = sbr.rel (%p403) target = $region72
      $region71: #{_lambda_.1} parent=67 // pred_region
        %p406 = scmp.lt.s32.totalorder %s20, 1
        %s407 = scalar_select %p406, %s20, 1
        %s408 = smul.addr %s407, 16
        %s409 = smul.addr %s408, 8
        %s410 = scalar_lea.vmem %s0, %s409
      $region72: #{_lambda_.1} parent=67 // pred_fallthru
        _
    $region68: #{_lambda_.1} parent=5 // pred_fallthru
      _
    %p411 = scmp.le.s32.totalorder 1, %s20
    %p412 = scmp.lt.s32.totalorder %s20, 3
    %p413 = pnand %p411, %p412
    %p414 = pneg %p413
    // Predicated region
    $region73: #{_lambda_.1} parent=5 // pred_check
      _
    $region74: #{_lambda_.1} parent=5 // pred_check_branch
      %416 = sbr.rel (%p413) target = $region76
    $region75: #{_lambda_.1} parent=5 // pred_region
      %s417 = ssub.s32 %s20, 1
      %p418 = scmp.lt.s32.totalorder %s25, 1
      %s419 = scalar_select %p418, %s25, 1
      %s420 = smul.addr %s419, 16
      %s421 = smul.addr %s420, 8
      %s422 = scalar_lea.vmem %s0, %s421
      %p423 = pneg %p46
      %p424 = pneg %p43
      %p425 = pneg %p67
      %p426 = pneg %p64
      %p427 = pneg %p88
      %p428 = pneg %p85
      %p429 = pneg %p109
      %p430 = pneg %p106
      %p431 = pneg %p130
      %p432 = pneg %p127
      %p433 = pneg %p151
      %p434 = pneg %p148
      %p435 = pneg %p172
      %p436 = pneg %p169
      %p437 = pneg %p193
      %p438 = pneg %p190
      %p439 = pneg %p214
      %p440 = pneg %p211
      %p441 = pneg %p235
      %p442 = pneg %p232
      %p443 = pneg %p256
      %p444 = pneg %p253
      %p445 = pneg %p277
      %p446 = pneg %p274
      %p447 = pneg %p298
      %p448 = pneg %p295
      %p449 = pneg %p319
      %p450 = pneg %p316
      %p451 = pneg %p345
      %p452 = pneg %p342
      %p453 = scmp.lt.s32.totalorder %s25, 1
      %s454 = scalar_select %p453, %s25, 1
      %s455 = smul.addr %s454, 16
      %s456 = smul.addr %s455, 8
      %s457 = scalar_lea.vmem %s14, %s456
      %p458 = scmp.lt.s32.totalorder %s25, 1
      %s459 = scalar_select %p458, %s25, 1
      %s460 = smul.addr %s459, 16
      %s461 = smul.addr %s460, 8
      %s462 = scalar_lea.vmem %s0, %s461
      %p463 = scmp.lt.s32.totalorder %s25, 1
      %s464 = scalar_select %p463, %s25, 1
      %s465 = smul.addr %s464, 16
      %s466 = smul.addr %s465, 8
      %s467 = scalar_lea.vmem %s14, %s466
      %v468 = vld [vmem:[%s462] sm:$0xff]
      %v469 = vld [vmem:[%s462 + $0x8] sm:$0xff]
      %v470 = vld [vmem:[%s462 + $0x10] sm:$0xff]
      %v471 = vld [vmem:[%s462 + $0x18] sm:$0xff]
      %v472 = vld [vmem:[%s462 + $0x20] sm:$0xff]
      %v473 = vld [vmem:[%s462 + $0x28] sm:$0xff]
      %v474 = vld [vmem:[%s462 + $0x30] sm:$0xff]
      %v475 = vld [vmem:[%s462 + $0x38] sm:$0xff]
      %v476 = vld [vmem:[%s462 + $0x40] sm:$0xff]
      %v477 = vld [vmem:[%s462 + $0x48] sm:$0xff]
      %v478 = vld [vmem:[%s462 + $0x50] sm:$0xff]
      %v479 = vld [vmem:[%s462 + $0x58] sm:$0xff]
      %v480 = vld [vmem:[%s462 + $0x60] sm:$0xff]
      %v481 = vld [vmem:[%s462 + $0x68] sm:$0xff]
      %v482 = vld [vmem:[%s462 + $0x70] sm:$0xff]
      %v483 = vld [vmem:[%s462 + $0x78] sm:$0xff]
      %v484 = vld [vmem:[%s1] sm:$0xff]
      %v485 = vld [vmem:[%s1 + $0x8] sm:$0xff]
      %v486 = vld [vmem:[%s1 + $0x10] sm:$0xff]
      %v487 = vld [vmem:[%s1 + $0x18] sm:$0xff]
      %v488 = vld [vmem:[%s1 + $0x20] sm:$0xff]
      %v489 = vld [vmem:[%s1 + $0x28] sm:$0xff]
      %v490 = vld [vmem:[%s1 + $0x30] sm:$0xff]
      %v491 = vld [vmem:[%s1 + $0x38] sm:$0xff]
      %v492 = vld [vmem:[%s1 + $0x40] sm:$0xff]
      %v493 = vld [vmem:[%s1 + $0x48] sm:$0xff]
      %v494 = vld [vmem:[%s1 + $0x50] sm:$0xff]
      %v495 = vld [vmem:[%s1 + $0x58] sm:$0xff]
      %v496 = vld [vmem:[%s1 + $0x60] sm:$0xff]
      %v497 = vld [vmem:[%s1 + $0x68] sm:$0xff]
      %v498 = vld [vmem:[%s1 + $0x70] sm:$0xff]
      %v499 = vld [vmem:[%s1 + $0x78] sm:$0xff]
      %v500 = vld [vmem:[%s1 + $0x80] sm:$0xff]
      %v501 = vld [vmem:[%s1 + $0x88] sm:$0xff]
      %v502 = vld [vmem:[%s1 + $0x90] sm:$0xff]
      %v503 = vld [vmem:[%s1 + $0x98] sm:$0xff]
      %v504 = vld [vmem:[%s1 + $0xa0] sm:$0xff]
      %v505 = vld [vmem:[%s1 + $0xa8] sm:$0xff]
      %v506 = vld [vmem:[%s1 + $0xb0] sm:$0xff]
      %v507 = vld [vmem:[%s1 + $0xb8] sm:$0xff]
      %v508 = vld [vmem:[%s1 + $0xc0] sm:$0xff]
      %v509 = vld [vmem:[%s1 + $0xc8] sm:$0xff]
      %v510 = vld [vmem:[%s1 + $0xd0] sm:$0xff]
      %v511 = vld [vmem:[%s1 + $0xd8] sm:$0xff]
      %v512 = vld [vmem:[%s1 + $0xe0] sm:$0xff]
      %v513 = vld [vmem:[%s1 + $0xe8] sm:$0xff]
      %v514 = vld [vmem:[%s1 + $0xf0] sm:$0xff]
      %v515 = vld [vmem:[%s1 + $0xf8] sm:$0xff]
      %516 = vmatprep.subr.mxu0 0.0
      %517 = vmatpush1.msra.mxu0 %v484
      %518 = vmatprep.subr.mxu0 0.0
      %519 = vmatpush1.msra.mxu0 %v485
      %520 = vmatprep.subr.mxu0 0.0
      %521 = vmatpush1.msra.mxu0 %v486
      %522 = vmatprep.subr.mxu0 0.0
      %523 = vmatpush1.msra.mxu0 %v487
      %524 = vmatprep.subr.mxu0 0.0
      %525 = vmatpush1.msra.mxu0 %v488
      %526 = vmatprep.subr.mxu0 0.0
      %527 = vmatpush1.msra.mxu0 %v489
      %528 = vmatprep.subr.mxu0 0.0
      %529 = vmatpush1.msra.mxu0 %v490
      %530 = vmatprep.subr.mxu0 0.0
      %531 = vmatpush1.msra.mxu0 %v491
      %532 = vmatprep.subr.mxu0 0.0
      %533 = vmatpush1.msra.mxu0 %v492
      %534 = vmatprep.subr.mxu0 0.0
      %535 = vmatpush1.msra.mxu0 %v493
      %536 = vmatprep.subr.mxu0 0.0
      %537 = vmatpush1.msra.mxu0 %v494
      %538 = vmatprep.subr.mxu0 0.0
      %539 = vmatpush1.msra.mxu0 %v495
      %540 = vmatprep.subr.mxu0 0.0
      %541 = vmatpush1.msra.mxu0 %v496
      %542 = vmatprep.subr.mxu0 0.0
      %543 = vmatpush1.msra.mxu0 %v497
      %544 = vmatprep.subr.mxu0 0.0
      %545 = vmatpush1.msra.mxu0 %v498
      %546 = vmatprep.subr.mxu0 0.0
      %547 = vmatpush1.msra.mxu0 %v499
      %548 = vmatprep.subr.mxu0 0.0
      %549 = vmatpush1.msra.mxu0 %v500
      %550 = vmatprep.subr.mxu0 0.0
      %551 = vmatpush1.msra.mxu0 %v501
      %552 = vmatprep.subr.mxu0 0.0
      %553 = vmatpush1.msra.mxu0 %v502
      %554 = vmatprep.subr.mxu0 0.0
      %555 = vmatpush1.msra.mxu0 %v503
      %556 = vmatprep.subr.mxu0 0.0
      %557 = vmatpush1.msra.mxu0 %v504
      %558 = vmatprep.subr.mxu0 0.0
      %559 = vmatpush1.msra.mxu0 %v505
      %560 = vmatprep.subr.mxu0 0.0
      %561 = vmatpush1.msra.mxu0 %v506
      %562 = vmatprep.subr.mxu0 0.0
      %563 = vmatpush1.msra.mxu0 %v507
      %564 = vmatprep.subr.mxu0 0.0
      %565 = vmatpush1.msra.mxu0 %v508
      %566 = vmatprep.subr.mxu0 0.0
      %567 = vmatpush1.msra.mxu0 %v509
      %568 = vmatprep.subr.mxu0 0.0
      %569 = vmatpush1.msra.mxu0 %v510
      %570 = vmatprep.subr.mxu0 0.0
      %571 = vmatpush1.msra.mxu0 %v511
      %572 = vmatprep.subr.mxu0 0.0
      %573 = vmatpush1.msra.mxu0 %v512
      %574 = vmatprep.subr.mxu0 0.0
      %575 = vmatpush1.msra.mxu0 %v513
      %576 = vmatprep.subr.mxu0 0.0
      %577 = vmatpush1.msra.mxu0 %v514
      %578 = vmatprep.subr.mxu0 0.0
      %579 = vmatpush1.msra.mxu0 %v515
      %580 = vmatprep.mubr.f32.mxu0 %v469
      %581 = vmatmul.mubr.f32.gmra.mrb[0].mxu0 %v468
      %v582 = vpop.f32.mrb[0].mxu0
      %v583 = vadd.f32 0.0, %v582
      %v584 = vpop.f32.mrb[0].mxu0
      %585 = vmatprep.mubr.f32.mxu0 %v471
      %586 = vmatmul.mubr.f32.gmra.mrb[0].mxu0 %v470
      %v587 = vpop.f32.mrb[0].mxu0
      %v588 = vadd.f32 0.0, %v587
      %v589 = vpop.f32.mrb[0].mxu0
      %590 = vmatprep.mubr.f32.mxu0 %v473
      %591 = vmatmul.mubr.f32.gmra.mrb[0].mxu0 %v472
      %v592 = vpop.f32.mrb[0].mxu0
      %v593 = vadd.f32 0.0, %v592
      %v594 = vpop.f32.mrb[0].mxu0
      %595 = vmatprep.mubr.f32.mxu0 %v475
      %596 = vmatmul.mubr.f32.gmra.mrb[0].mxu0 %v474
      %v597 = vpop.f32.mrb[0].mxu0
      %v598 = vadd.f32 0.0, %v597
      %v599 = vpop.f32.mrb[0].mxu0
      %600 = vmatprep.mubr.f32.mxu0 %v477
      %601 = vmatmul.mubr.f32.gmra.mrb[0].mxu0 %v476
      %v602 = vpop.f32.mrb[0].mxu0
      %v603 = vadd.f32 0.0, %v602
      %v604 = vpop.f32.mrb[0].mxu0
      %605 = vmatprep.mubr.f32.mxu0 %v479
      %606 = vmatmul.mubr.f32.gmra.mrb[0].mxu0 %v478
      %v607 = vpop.f32.mrb[0].mxu0
      %v608 = vadd.f32 0.0, %v607
      %v609 = vpop.f32.mrb[0].mxu0
      %610 = vmatprep.mubr.f32.mxu0 %v481
      %611 = vmatmul.mubr.f32.gmra.mrb[0].mxu0 %v480
      %v612 = vpop.f32.mrb[0].mxu0
      %v613 = vadd.f32 0.0, %v612
      %v614 = vpop.f32.mrb[0].mxu0
      %615 = vmatprep.mubr.f32.mxu0 %v483
      %616 = vmatmul.mubr.f32.gmra.mrb[0].mxu0 %v482
      %v617 = vpop.f32.mrb[0].mxu0
      %v618 = vadd.f32 0.0, %v617
      %v619 = vpop.f32.mrb[0].mxu0
      %620 = vdwg.mxu0
      %v621 = vld [vmem:[%s3] sm:$0xff]
      %v622 = vld [vmem:[%s3 + $0x8] sm:$0xff]
      %v623 = vld [vmem:[%s3 + $0x10] sm:$0xff]
      %v624 = vld [vmem:[%s3 + $0x18] sm:$0xff]
      %v625 = vld [vmem:[%s3 + $0x20] sm:$0xff]
      %v626 = vld [vmem:[%s3 + $0x28] sm:$0xff]
      %v627 = vld [vmem:[%s3 + $0x30] sm:$0xff]
      %v628 = vld [vmem:[%s3 + $0x38] sm:$0xff]
      %vm629 = vcmask 523264
      %v631 = vsel %vm629, %v621, 0
      %v634 = vsel %vm629, %v622, 0
      %v637 = vsel %vm629, %v623, 0
      %v640 = vsel %vm629, %v624, 0
      %v643 = vsel %vm629, %v625, 0
      %v646 = vsel %vm629, %v626, 0
      %v649 = vsel %vm629, %v627, 0
      %v652 = vsel %vm629, %v628, 0
      %654 = vmatprep.subr.mxu0 0.0
      %655 = vmatpush1.msra.mxu0 %v583
      %656 = vmatprep.subr.mxu0 0.0
      %657 = vmatpush1.msra.mxu0 %v588
      %658 = vmatprep.subr.mxu0 0.0
      %659 = vmatpush1.msra.mxu0 %v593
      %660 = vmatprep.subr.mxu0 0.0
      %661 = vmatpush1.msra.mxu0 %v598
      %662 = vmatprep.subr.mxu0 0.0
      %663 = vmatpush1.msra.mxu0 %v603
      %664 = vmatprep.subr.mxu0 0.0
      %665 = vmatpush1.msra.mxu0 %v608
      %666 = vmatprep.subr.mxu0 0.0
      %667 = vmatpush1.msra.mxu0 %v613
      %668 = vmatprep.subr.mxu0 0.0
      %669 = vmatpush1.msra.mxu0 %v618
      %670 = vmatprep.subr.mxu0 0.0
      %671 = vmatpush1.msra.mxu0 0.0
      %672 = vmatprep.subr.mxu0 0.0
      %673 = vmatpush1.msra.mxu0 0.0
      %674 = vmatprep.subr.mxu0 0.0
      %675 = vmatpush1.msra.mxu0 0.0
      %676 = vmatprep.subr.mxu0 0.0
      %677 = vmatpush1.msra.mxu0 0.0
      %678 = vmatprep.subr.mxu0 0.0
      %679 = vmatpush1.msra.mxu0 0.0
      %680 = vmatprep.subr.mxu0 0.0
      %681 = vmatpush1.msra.mxu0 0.0
      %682 = vmatprep.subr.mxu0 0.0
      %683 = vmatpush1.msra.mxu0 0.0
      %684 = vmatprep.subr.mxu0 0.0
      %685 = vmatpush1.msra.mxu0 0.0
      %686 = vmatprep.subr.mxu0 0.0
      %687 = vmatpush1.msra.mxu0 0.0
      %688 = vmatprep.subr.mxu0 0.0
      %689 = vmatpush1.msra.mxu0 0.0
      %690 = vmatprep.subr.mxu0 0.0
      %691 = vmatpush1.msra.mxu0 0.0
      %692 = vmatprep.subr.mxu0 0.0
      %693 = vmatpush1.msra.mxu0 0.0
      %694 = vmatprep.subr.mxu0 0.0
      %695 = vmatpush1.msra.mxu0 0.0
      %696 = vmatprep.subr.mxu0 0.0
      %697 = vmatpush1.msra.mxu0 0.0
      %698 = vmatprep.subr.mxu0 0.0
      %699 = vmatpush1.msra.mxu0 0.0
      %700 = vmatprep.subr.mxu0 0.0
      %701 = vmatpush1.msra.mxu0 0.0
      %702 = vmatprep.subr.mxu0 0.0
      %703 = vmatpush1.msra.mxu0 0.0
      %704 = vmatprep.subr.mxu0 0.0
      %705 = vmatpush1.msra.mxu0 0.0
      %706 = vmatprep.subr.mxu0 0.0
      %707 = vmatpush1.msra.mxu0 0.0
      %708 = vmatprep.subr.mxu0 0.0
      %709 = vmatpush1.msra.mxu0 0.0
      %710 = vmatprep.subr.mxu0 0.0
      %711 = vmatpush1.msra.mxu0 0.0
      %712 = vmatprep.subr.mxu0 0.0
      %713 = vmatpush1.msra.mxu0 0.0
      %714 = vmatprep.subr.mxu0 0.0
      %715 = vmatpush1.msra.mxu0 0.0
      %716 = vmatprep.subr.mxu0 0.0
      %717 = vmatpush1.msra.mxu0 0.0
      %718 = vmatprep.mubr.f32.mxu0 0.0
      %719 = vmatmul.mubr.f32.gmra.mrb[0].mxu0 %v631
      %v720 = vpop.f32.mrb[0].mxu0
      %v721 = vadd.f32 0.0, %v720
      %v722 = vpop.f32.mrb[0].mxu0
      %723 = vmatprep.mubr.f32.mxu0 0.0
      %724 = vmatmul.mubr.f32.gmra.mrb[0].mxu0 %v634
      %v725 = vpop.f32.mrb[0].mxu0
      %v726 = vadd.f32 0.0, %v725
      %v727 = vpop.f32.mrb[0].mxu0
      %728 = vmatprep.mubr.f32.mxu0 0.0
      %729 = vmatmul.mubr.f32.gmra.mrb[0].mxu0 %v637
      %v730 = vpop.f32.mrb[0].mxu0
      %v731 = vadd.f32 0.0, %v730
      %v732 = vpop.f32.mrb[0].mxu0
      %733 = vmatprep.mubr.f32.mxu0 0.0
      %734 = vmatmul.mubr.f32.gmra.mrb[0].mxu0 %v640
      %v735 = vpop.f32.mrb[0].mxu0
      %v736 = vadd.f32 0.0, %v735
      %v737 = vpop.f32.mrb[0].mxu0
      %738 = vmatprep.mubr.f32.mxu0 0.0
      %739 = vmatmul.mubr.f32.gmra.mrb[0].mxu0 %v643
      %v740 = vpop.f32.mrb[0].mxu0
      %v741 = vadd.f32 0.0, %v740
      %v742 = vpop.f32.mrb[0].mxu0
      %743 = vmatprep.mubr.f32.mxu0 0.0
      %744 = vmatmul.mubr.f32.gmra.mrb[0].mxu0 %v646
      %v745 = vpop.f32.mrb[0].mxu0
      %v746 = vadd.f32 0.0, %v745
      %v747 = vpop.f32.mrb[0].mxu0
      %748 = vmatprep.mubr.f32.mxu0 0.0
      %749 = vmatmul.mubr.f32.gmra.mrb[0].mxu0 %v649
      %v750 = vpop.f32.mrb[0].mxu0
      %v751 = vadd.f32 0.0, %v750
      %v752 = vpop.f32.mrb[0].mxu0
      %753 = vmatprep.mubr.f32.mxu0 0.0
      %754 = vmatmul.mubr.f32.gmra.mrb[0].mxu0 %v652
      %v755 = vpop.f32.mrb[0].mxu0
      %v756 = vadd.f32 0.0, %v755
      %v757 = vpop.f32.mrb[0].mxu0
      %758 = vdwg.mxu0
      %v759 = vmul.f32 %v583, %v583
      %v760 = vmul.f32 %v588, %v588
      %v761 = vmul.f32 %v593, %v593
      %v762 = vmul.f32 %v598, %v598
      %v763 = vmul.f32 %v603, %v603
      %v764 = vmul.f32 %v608, %v608
      %v765 = vmul.f32 %v613, %v613
      %v766 = vmul.f32 %v618, %v618
      %767 = vmatprep.subr.mxu0 0.0
      %768 = vmatpush1.msra.mxu0 %v759
      %769 = vmatprep.subr.mxu0 0.0
      %770 = vmatpush1.msra.mxu0 %v760
      %771 = vmatprep.subr.mxu0 0.0
      %772 = vmatpush1.msra.mxu0 %v761
      %773 = vmatprep.subr.mxu0 0.0
      %774 = vmatpush1.msra.mxu0 %v762
      %775 = vmatprep.subr.mxu0 0.0
      %776 = vmatpush1.msra.mxu0 %v763
      %777 = vmatprep.subr.mxu0 0.0
      %778 = vmatpush1.msra.mxu0 %v764
      %779 = vmatprep.subr.mxu0 0.0
      %780 = vmatpush1.msra.mxu0 %v765
      %781 = vmatprep.subr.mxu0 0.0
      %782 = vmatpush1.msra.mxu0 %v766
      %783 = vmatprep.subr.mxu0 0.0
      %784 = vmatpush1.msra.mxu0 0.0
      %785 = vmatprep.subr.mxu0 0.0
      %786 = vmatpush1.msra.mxu0 0.0
      %787 = vmatprep.subr.mxu0 0.0
      %788 = vmatpush1.msra.mxu0 0.0
      %789 = vmatprep.subr.mxu0 0.0
      %790 = vmatpush1.msra.mxu0 0.0
      %791 = vmatprep.subr.mxu0 0.0
      %792 = vmatpush1.msra.mxu0 0.0
      %793 = vmatprep.subr.mxu0 0.0
      %794 = vmatpush1.msra.mxu0 0.0
      %795 = vmatprep.subr.mxu0 0.0
      %796 = vmatpush1.msra.mxu0 0.0
      %797 = vmatprep.subr.mxu0 0.0
      %798 = vmatpush1.msra.mxu0 0.0
      %799 = vmatprep.subr.mxu0 0.0
      %800 = vmatpush1.msra.mxu0 0.0
      %801 = vmatprep.subr.mxu0 0.0
      %802 = vmatpush1.msra.mxu0 0.0
      %803 = vmatprep.subr.mxu0 0.0
      %804 = vmatpush1.msra.mxu0 0.0
      %805 = vmatprep.subr.mxu0 0.0
      %806 = vmatpush1.msra.mxu0 0.0
      %807 = vmatprep.subr.mxu0 0.0
      %808 = vmatpush1.msra.mxu0 0.0
      %809 = vmatprep.subr.mxu0 0.0
      %810 = vmatpush1.msra.mxu0 0.0
      %811 = vmatprep.subr.mxu0 0.0
      %812 = vmatpush1.msra.mxu0 0.0
      %813 = vmatprep.subr.mxu0 0.0
      %814 = vmatpush1.msra.mxu0 0.0
      %815 = vmatprep.subr.mxu0 0.0
      %816 = vmatpush1.msra.mxu0 0.0
      %817 = vmatprep.subr.mxu0 0.0
      %818 = vmatpush1.msra.mxu0 0.0
      %819 = vmatprep.subr.mxu0 0.0
      %820 = vmatpush1.msra.mxu0 0.0
      %821 = vmatprep.subr.mxu0 0.0
      %822 = vmatpush1.msra.mxu0 0.0
      %823 = vmatprep.subr.mxu0 0.0
      %824 = vmatpush1.msra.mxu0 0.0
      %825 = vmatprep.subr.mxu0 0.0
      %826 = vmatpush1.msra.mxu0 0.0
      %827 = vmatprep.subr.mxu0 0.0
      %828 = vmatpush1.msra.mxu0 0.0
      %829 = vmatprep.subr.mxu0 0.0
      %830 = vmatpush1.msra.mxu0 0.0
      %831 = vmatprep.mubr.f32.mxu0 0.0
      %832 = vmatmul.mubr.f32.gmra.mrb[0].mxu0 %v631
      %v833 = vpop.f32.mrb[0].mxu0
      %v834 = vadd.f32 0.0, %v833
      %v835 = vpop.f32.mrb[0].mxu0
      %836 = vmatprep.mubr.f32.mxu0 0.0
      %837 = vmatmul.mubr.f32.gmra.mrb[0].mxu0 %v634
      %v838 = vpop.f32.mrb[0].mxu0
      %v839 = vadd.f32 0.0, %v838
      %v840 = vpop.f32.mrb[0].mxu0
      %841 = vmatprep.mubr.f32.mxu0 0.0
      %842 = vmatmul.mubr.f32.gmra.mrb[0].mxu0 %v637
      %v843 = vpop.f32.mrb[0].mxu0
      %v844 = vadd.f32 0.0, %v843
      %v845 = vpop.f32.mrb[0].mxu0
      %846 = vmatprep.mubr.f32.mxu0 0.0
      %847 = vmatmul.mubr.f32.gmra.mrb[0].mxu0 %v640
      %v848 = vpop.f32.mrb[0].mxu0
      %v849 = vadd.f32 0.0, %v848
      %v850 = vpop.f32.mrb[0].mxu0
      %851 = vmatprep.mubr.f32.mxu0 0.0
      %852 = vmatmul.mubr.f32.gmra.mrb[0].mxu0 %v643
      %v853 = vpop.f32.mrb[0].mxu0
      %v854 = vadd.f32 0.0, %v853
      %v855 = vpop.f32.mrb[0].mxu0
      %856 = vmatprep.mubr.f32.mxu0 0.0
      %857 = vmatmul.mubr.f32.gmra.mrb[0].mxu0 %v646
      %v858 = vpop.f32.mrb[0].mxu0
      %v859 = vadd.f32 0.0, %v858
      %v860 = vpop.f32.mrb[0].mxu0
      %861 = vmatprep.mubr.f32.mxu0 0.0
      %862 = vmatmul.mubr.f32.gmra.mrb[0].mxu0 %v649
      %v863 = vpop.f32.mrb[0].mxu0
      %v864 = vadd.f32 0.0, %v863
      %v865 = vpop.f32.mrb[0].mxu0
      %866 = vmatprep.mubr.f32.mxu0 0.0
      %867 = vmatmul.mubr.f32.gmra.mrb[0].mxu0 %v652
      %v868 = vpop.f32.mrb[0].mxu0
      %v869 = vadd.f32 0.0, %v868
      %v870 = vpop.f32.mrb[0].mxu0
      %871 = vdwg.mxu0
      %vm872 = vcmask 130048
      %v873 = vsel %vm872, %v721, 0.0
      %874 = vadd.xlane.f32.xlu0 %v873
      %v875 = vpop.xlane.xlu0 %874
      %v876 = vsel %vm872, %v726, 0.0
      %877 = vadd.xlane.f32.xlu0 %v876
      %v878 = vpop.xlane.xlu0 %877
      %v879 = vsel %vm872, %v731, 0.0
      %880 = vadd.xlane.f32.xlu0 %v879
      %v881 = vpop.xlane.xlu0 %880
      %v882 = vsel %vm872, %v736, 0.0
      %883 = vadd.xlane.f32.xlu0 %v882
      %v884 = vpop.xlane.xlu0 %883
      %v885 = vsel %vm872, %v741, 0.0
      %886 = vadd.xlane.f32.xlu0 %v885
      %v887 = vpop.xlane.xlu0 %886
      %v888 = vsel %vm872, %v746, 0.0
      %889 = vadd.xlane.f32.xlu0 %v888
      %v890 = vpop.xlane.xlu0 %889
      %v891 = vsel %vm872, %v751, 0.0
      %892 = vadd.xlane.f32.xlu0 %v891
      %v893 = vpop.xlane.xlu0 %892
      %v894 = vsel %vm872, %v756, 0.0
      %895 = vadd.xlane.f32.xlu0 %v894
      %v896 = vpop.xlane.xlu0 %895
      %v897 = vmul.f32 %v875, 0.0625
      %v898 = vmul.f32 %v878, 0.0625
      %v899 = vmul.f32 %v881, 0.0625
      %v900 = vmul.f32 %v884, 0.0625
      %v901 = vmul.f32 %v887, 0.0625
      %v902 = vmul.f32 %v890, 0.0625
      %v903 = vmul.f32 %v893, 0.0625
      %v904 = vmul.f32 %v896, 0.0625
      %v905 = vsel %vm872, %v834, 0.0
      %906 = vadd.xlane.f32.xlu0 %v905
      %v907 = vpop.xlane.xlu0 %906
      %v908 = vsel %vm872, %v839, 0.0
      %909 = vadd.xlane.f32.xlu0 %v908
      %v910 = vpop.xlane.xlu0 %909
      %v911 = vsel %vm872, %v844, 0.0
      %912 = vadd.xlane.f32.xlu0 %v911
      %v913 = vpop.xlane.xlu0 %912
      %v914 = vsel %vm872, %v849, 0.0
      %915 = vadd.xlane.f32.xlu0 %v914
      %v916 = vpop.xlane.xlu0 %915
      %v917 = vsel %vm872, %v854, 0.0
      %918 = vadd.xlane.f32.xlu0 %v917
      %v919 = vpop.xlane.xlu0 %918
      %v920 = vsel %vm872, %v859, 0.0
      %921 = vadd.xlane.f32.xlu0 %v920
      %v922 = vpop.xlane.xlu0 %921
      %v923 = vsel %vm872, %v864, 0.0
      %924 = vadd.xlane.f32.xlu0 %v923
      %v925 = vpop.xlane.xlu0 %924
      %v926 = vsel %vm872, %v869, 0.0
      %927 = vadd.xlane.f32.xlu0 %v926
      %v928 = vpop.xlane.xlu0 %927
      %v929 = vmul.f32 %v907, 0.0625
      %v930 = vmul.f32 %v910, 0.0625
      %v931 = vmul.f32 %v913, 0.0625
      %v932 = vmul.f32 %v916, 0.0625
      %v933 = vmul.f32 %v919, 0.0625
      %v934 = vmul.f32 %v922, 0.0625
      %v935 = vmul.f32 %v925, 0.0625
      %v936 = vmul.f32 %v928, 0.0625
      %v937 = vmul.f32 %v897, %v897
      %v938 = vmul.f32 %v898, %v898
      %v939 = vmul.f32 %v899, %v899
      %v940 = vmul.f32 %v900, %v900
      %v941 = vmul.f32 %v901, %v901
      %v942 = vmul.f32 %v902, %v902
      %v943 = vmul.f32 %v903, %v903
      %v944 = vmul.f32 %v904, %v904
      %v945 = vsub.f32 %v929, %v937
      %v946 = vsub.f32 %v930, %v938
      %v947 = vsub.f32 %v931, %v939
      %v948 = vsub.f32 %v932, %v940
      %v949 = vsub.f32 %v933, %v941
      %v950 = vsub.f32 %v934, %v942
      %v951 = vsub.f32 %v935, %v943
      %v952 = vsub.f32 %v936, %v944
      %v953 = vsub.f32 %v583, %v897
      %v954 = vsub.f32 %v588, %v898
      %v955 = vsub.f32 %v593, %v899
      %v956 = vsub.f32 %v598, %v900
      %v957 = vsub.f32 %v603, %v901
      %v958 = vsub.f32 %v608, %v902
      %v959 = vsub.f32 %v613, %v903
      %v960 = vsub.f32 %v618, %v904
      %v961 = vadd.f32 %v945, 1e-05
      %v962 = vadd.f32 %v946, 1e-05
      %v963 = vadd.f32 %v947, 1e-05
      %v964 = vadd.f32 %v948, 1e-05
      %v965 = vadd.f32 %v949, 1e-05
      %v966 = vadd.f32 %v950, 1e-05
      %v967 = vadd.f32 %v951, 1e-05
      %v968 = vadd.f32 %v952, 1e-05
      %v969 = vrsqrt.pop %v961
      %v970 = vrsqrt.pop %v962
      %v971 = vrsqrt.pop %v963
      %v972 = vrsqrt.pop %v964
      %v973 = vrsqrt.pop %v965
      %v974 = vrsqrt.pop %v966
      %v975 = vrsqrt.pop %v967
      %v976 = vrsqrt.pop %v968
      %v977 = vld [vmem:[%s4] sm:$0xff]
      %v978 = vld [vmem:[%s4 + $0x8] sm:$0xff]
      %v979 = vld [vmem:[%s4 + $0x10] sm:$0xff]
      %v980 = vld [vmem:[%s4 + $0x18] sm:$0xff]
      %v981 = vld [vmem:[%s4 + $0x20] sm:$0xff]
      %v982 = vld [vmem:[%s4 + $0x28] sm:$0xff]
      %v983 = vld [vmem:[%s4 + $0x30] sm:$0xff]
      %v984 = vld [vmem:[%s4 + $0x38] sm:$0xff]
      %v985 = vmul.f32 %v969, %v977
      %v986 = vmul.f32 %v970, %v978
      %v987 = vmul.f32 %v971, %v979
      %v988 = vmul.f32 %v972, %v980
      %v989 = vmul.f32 %v973, %v981
      %v990 = vmul.f32 %v974, %v982
      %v991 = vmul.f32 %v975, %v983
      %v992 = vmul.f32 %v976, %v984
      %994 = vset.pattern.permute.xlu0 0
      %995 = vperm.xlu0 %994, %v985
      %v996 = vpop.permute.xlu0 %995
      %999 = vset.pattern.permute.xlu0 0
      %1000 = vperm.xlu0 %999, %v986
      %v1001 = vpop.permute.xlu0 %1000
      %1004 = vset.pattern.permute.xlu0 0
      %1005 = vperm.xlu0 %1004, %v987
      %v1006 = vpop.permute.xlu0 %1005
      %1009 = vset.pattern.permute.xlu0 0
      %1010 = vperm.xlu0 %1009, %v988
      %v1011 = vpop.permute.xlu0 %1010
      %1014 = vset.pattern.permute.xlu0 0
      %1015 = vperm.xlu0 %1014, %v989
      %v1016 = vpop.permute.xlu0 %1015
      %1019 = vset.pattern.permute.xlu0 0
      %1020 = vperm.xlu0 %1019, %v990
      %v1021 = vpop.permute.xlu0 %1020
      %1024 = vset.pattern.permute.xlu0 0
      %1025 = vperm.xlu0 %1024, %v991
      %v1026 = vpop.permute.xlu0 %1025
      %1029 = vset.pattern.permute.xlu0 0
      %1030 = vperm.xlu0 %1029, %v992
      %v1031 = vpop.permute.xlu0 %1030
      %v1033 = vmul.f32 %v953, %v996
      %v1034 = vmul.f32 %v954, %v1001
      %v1035 = vmul.f32 %v955, %v1006
      %v1036 = vmul.f32 %v956, %v1011
      %v1037 = vmul.f32 %v957, %v1016
      %v1038 = vmul.f32 %v958, %v1021
      %v1039 = vmul.f32 %v959, %v1026
      %v1040 = vmul.f32 %v960, %v1031
      %v1041 = vld [vmem:[%s5] sm:$0xff]
      %v1042 = vld [vmem:[%s5 + $0x8] sm:$0xff]
      %v1043 = vld [vmem:[%s5 + $0x10] sm:$0xff]
      %v1044 = vld [vmem:[%s5 + $0x18] sm:$0xff]
      %v1045 = vld [vmem:[%s5 + $0x20] sm:$0xff]
      %v1046 = vld [vmem:[%s5 + $0x28] sm:$0xff]
      %v1047 = vld [vmem:[%s5 + $0x30] sm:$0xff]
      %v1048 = vld [vmem:[%s5 + $0x38] sm:$0xff]
      %1050 = vset.pattern.permute.xlu0 0
      %1051 = vperm.xlu0 %1050, %v1041
      %v1052 = vpop.permute.xlu0 %1051
      %1055 = vset.pattern.permute.xlu0 0
      %1056 = vperm.xlu0 %1055, %v1042
      %v1057 = vpop.permute.xlu0 %1056
      %1060 = vset.pattern.permute.xlu0 0
      %1061 = vperm.xlu0 %1060, %v1043
      %v1062 = vpop.permute.xlu0 %1061
      %1065 = vset.pattern.permute.xlu0 0
      %1066 = vperm.xlu0 %1065, %v1044
      %v1067 = vpop.permute.xlu0 %1066
      %1070 = vset.pattern.permute.xlu0 0
      %1071 = vperm.xlu0 %1070, %v1045
      %v1072 = vpop.permute.xlu0 %1071
      %1075 = vset.pattern.permute.xlu0 0
      %1076 = vperm.xlu0 %1075, %v1046
      %v1077 = vpop.permute.xlu0 %1076
      %1080 = vset.pattern.permute.xlu0 0
      %1081 = vperm.xlu0 %1080, %v1047
      %v1082 = vpop.permute.xlu0 %1081
      %1085 = vset.pattern.permute.xlu0 0
      %1086 = vperm.xlu0 %1085, %v1048
      %v1087 = vpop.permute.xlu0 %1086
      %v1089 = vadd.f32 %v1033, %v1052
      %v1090 = vadd.f32 %v1034, %v1057
      %v1091 = vadd.f32 %v1035, %v1062
      %v1092 = vadd.f32 %v1036, %v1067
      %v1093 = vadd.f32 %v1037, %v1072
      %v1094 = vadd.f32 %v1038, %v1077
      %v1095 = vadd.f32 %v1039, %v1082
      %v1096 = vadd.f32 %v1040, %v1087
      %v1097 = vld [vmem:[%s6] sm:$0xff]
      %v1098 = vld [vmem:[%s6 + $0x8] sm:$0xff]
      %v1099 = vld [vmem:[%s6 + $0x10] sm:$0xff]
      %v1100 = vld [vmem:[%s6 + $0x18] sm:$0xff]
      %v1101 = vld [vmem:[%s6 + $0x20] sm:$0xff]
      %v1102 = vld [vmem:[%s6 + $0x28] sm:$0xff]
      %v1103 = vld [vmem:[%s6 + $0x30] sm:$0xff]
      %v1104 = vld [vmem:[%s6 + $0x38] sm:$0xff]
      %v1105 = vld [vmem:[%s6 + $0x40] sm:$0xff]
      %v1106 = vld [vmem:[%s6 + $0x48] sm:$0xff]
      %v1107 = vld [vmem:[%s6 + $0x50] sm:$0xff]
      %v1108 = vld [vmem:[%s6 + $0x58] sm:$0xff]
      %v1109 = vld [vmem:[%s6 + $0x60] sm:$0xff]
      %v1110 = vld [vmem:[%s6 + $0x68] sm:$0xff]
      %v1111 = vld [vmem:[%s6 + $0x70] sm:$0xff]
      %v1112 = vld [vmem:[%s6 + $0x78] sm:$0xff]
      %v1113 = vld [vmem:[%s6 + $0x80] sm:$0xff]
      %v1114 = vld [vmem:[%s6 + $0x88] sm:$0xff]
      %v1115 = vld [vmem:[%s6 + $0x90] sm:$0xff]
      %v1116 = vld [vmem:[%s6 + $0x98] sm:$0xff]
      %v1117 = vld [vmem:[%s6 + $0xa0] sm:$0xff]
      %v1118 = vld [vmem:[%s6 + $0xa8] sm:$0xff]
      %v1119 = vld [vmem:[%s6 + $0xb0] sm:$0xff]
      %v1120 = vld [vmem:[%s6 + $0xb8] sm:$0xff]
      %v1121 = vld [vmem:[%s7] sm:$0xff]
      %v1122 = vld [vmem:[%s7 + $0x8] sm:$0xff]
      %v1123 = vld [vmem:[%s7 + $0x10] sm:$0xff]
      %v1124 = vld [vmem:[%s7 + $0x18] sm:$0xff]
      %v1125 = vld [vmem:[%s7 + $0x20] sm:$0xff]
      %v1126 = vld [vmem:[%s7 + $0x28] sm:$0xff]
      %v1127 = vld [vmem:[%s7 + $0x30] sm:$0xff]
      %v1128 = vld [vmem:[%s7 + $0x38] sm:$0xff]
      %v1129 = vld [vmem:[%s7 + $0x40] sm:$0xff]
      %v1130 = vld [vmem:[%s7 + $0x48] sm:$0xff]
      %v1131 = vld [vmem:[%s7 + $0x50] sm:$0xff]
      %v1132 = vld [vmem:[%s7 + $0x58] sm:$0xff]
      %v1133 = vld [vmem:[%s7 + $0x60] sm:$0xff]
      %v1134 = vld [vmem:[%s7 + $0x68] sm:$0xff]
      %v1135 = vld [vmem:[%s7 + $0x70] sm:$0xff]
      %v1136 = vld [vmem:[%s7 + $0x78] sm:$0xff]
      %v1137 = vld [vmem:[%s7 + $0x80] sm:$0xff]
      %v1138 = vld [vmem:[%s7 + $0x88] sm:$0xff]
      %v1139 = vld [vmem:[%s7 + $0x90] sm:$0xff]
      %v1140 = vld [vmem:[%s7 + $0x98] sm:$0xff]
      %v1141 = vld [vmem:[%s7 + $0xa0] sm:$0xff]
      %v1142 = vld [vmem:[%s7 + $0xa8] sm:$0xff]
      %v1143 = vld [vmem:[%s7 + $0xb0] sm:$0xff]
      %v1144 = vld [vmem:[%s7 + $0xb8] sm:$0xff]
      %1146 = vset.pattern.permute.xlu0 0
      %1147 = vperm.xlu0 %1146, %v1121
      %v1148 = vpop.permute.xlu0 %1147
      %1151 = vset.pattern.permute.xlu0 0
      %1152 = vperm.xlu0 %1151, %v1122
      %v1153 = vpop.permute.xlu0 %1152
      %1156 = vset.pattern.permute.xlu0 0
      %1157 = vperm.xlu0 %1156, %v1123
      %v1158 = vpop.permute.xlu0 %1157
      %1161 = vset.pattern.permute.xlu0 0
      %1162 = vperm.xlu0 %1161, %v1124
      %v1163 = vpop.permute.xlu0 %1162
      %1166 = vset.pattern.permute.xlu0 0
      %1167 = vperm.xlu0 %1166, %v1125
      %v1168 = vpop.permute.xlu0 %1167
      %1171 = vset.pattern.permute.xlu0 0
      %1172 = vperm.xlu0 %1171, %v1126
      %v1173 = vpop.permute.xlu0 %1172
      %1176 = vset.pattern.permute.xlu0 0
      %1177 = vperm.xlu0 %1176, %v1127
      %v1178 = vpop.permute.xlu0 %1177
      %1181 = vset.pattern.permute.xlu0 0
      %1182 = vperm.xlu0 %1181, %v1128
      %v1183 = vpop.permute.xlu0 %1182
      %1186 = vset.pattern.permute.xlu0 0
      %1187 = vperm.xlu0 %1186, %v1129
      %v1188 = vpop.permute.xlu0 %1187
      %1191 = vset.pattern.permute.xlu0 0
      %1192 = vperm.xlu0 %1191, %v1130
      %v1193 = vpop.permute.xlu0 %1192
      %1196 = vset.pattern.permute.xlu0 0
      %1197 = vperm.xlu0 %1196, %v1131
      %v1198 = vpop.permute.xlu0 %1197
      %1201 = vset.pattern.permute.xlu0 0
      %1202 = vperm.xlu0 %1201, %v1132
      %v1203 = vpop.permute.xlu0 %1202
      %1206 = vset.pattern.permute.xlu0 0
      %1207 = vperm.xlu0 %1206, %v1133
      %v1208 = vpop.permute.xlu0 %1207
      %1211 = vset.pattern.permute.xlu0 0
      %1212 = vperm.xlu0 %1211, %v1134
      %v1213 = vpop.permute.xlu0 %1212
      %1216 = vset.pattern.permute.xlu0 0
      %1217 = vperm.xlu0 %1216, %v1135
      %v1218 = vpop.permute.xlu0 %1217
      %1221 = vset.pattern.permute.xlu0 0
      %1222 = vperm.xlu0 %1221, %v1136
      %v1223 = vpop.permute.xlu0 %1222
      %1226 = vset.pattern.permute.xlu0 0
      %1227 = vperm.xlu0 %1226, %v1137
      %v1228 = vpop.permute.xlu0 %1227
      %1231 = vset.pattern.permute.xlu0 0
      %1232 = vperm.xlu0 %1231, %v1138
      %v1233 = vpop.permute.xlu0 %1232
      %1236 = vset.pattern.permute.xlu0 0
      %1237 = vperm.xlu0 %1236, %v1139
      %v1238 = vpop.permute.xlu0 %1237
      %1241 = vset.pattern.permute.xlu0 0
      %1242 = vperm.xlu0 %1241, %v1140
      %v1243 = vpop.permute.xlu0 %1242
      %1246 = vset.pattern.permute.xlu0 0
      %1247 = vperm.xlu0 %1246, %v1141
      %v1248 = vpop.permute.xlu0 %1247
      %1251 = vset.pattern.permute.xlu0 0
      %1252 = vperm.xlu0 %1251, %v1142
      %v1253 = vpop.permute.xlu0 %1252
      %1256 = vset.pattern.permute.xlu0 0
      %1257 = vperm.xlu0 %1256, %v1143
      %v1258 = vpop.permute.xlu0 %1257
      %1261 = vset.pattern.permute.xlu0 0
      %1262 = vperm.xlu0 %1261, %v1144
      %v1263 = vpop.permute.xlu0 %1262
      %v1266 = vsel %vm629, %v1097, 0
      %v1269 = vsel %vm629, %v1098, 0
      %v1272 = vsel %vm629, %v1099, 0
      %v1275 = vsel %vm629, %v1100, 0
      %v1278 = vsel %vm629, %v1101, 0
      %v1281 = vsel %vm629, %v1102, 0
      %v1284 = vsel %vm629, %v1103, 0
      %v1287 = vsel %vm629, %v1104, 0
      %v1290 = vsel %vm629, %v1105, 0
      %v1293 = vsel %vm629, %v1106, 0
      %v1296 = vsel %vm629, %v1107, 0
      %v1299 = vsel %vm629, %v1108, 0
      %v1302 = vsel %vm629, %v1109, 0
      %v1305 = vsel %vm629, %v1110, 0
      %v1308 = vsel %vm629, %v1111, 0
      %v1311 = vsel %vm629, %v1112, 0
      %v1314 = vsel %vm629, %v1113, 0
      %v1317 = vsel %vm629, %v1114, 0
      %v1320 = vsel %vm629, %v1115, 0
      %v1323 = vsel %vm629, %v1116, 0
      %v1326 = vsel %vm629, %v1117, 0
      %v1329 = vsel %vm629, %v1118, 0
      %v1332 = vsel %vm629, %v1119, 0
      %v1335 = vsel %vm629, %v1120, 0
      %1337 = vmatprep.subr.mxu0 0.0
      %1338 = vmatpush1.msra.mxu0 %v1089
      %1339 = vmatprep.subr.mxu0 0.0
      %1340 = vmatpush1.msra.mxu0 %v1090
      %1341 = vmatprep.subr.mxu0 0.0
      %1342 = vmatpush1.msra.mxu0 %v1091
      %1343 = vmatprep.subr.mxu0 0.0
      %1344 = vmatpush1.msra.mxu0 %v1092
      %1345 = vmatprep.subr.mxu0 0.0
      %1346 = vmatpush1.msra.mxu0 %v1093
      %1347 = vmatprep.subr.mxu0 0.0
      %1348 = vmatpush1.msra.mxu0 %v1094
      %1349 = vmatprep.subr.mxu0 0.0
      %1350 = vmatpush1.msra.mxu0 %v1095
      %1351 = vmatprep.subr.mxu0 0.0
      %1352 = vmatpush1.msra.mxu0 %v1096
      %1353 = vmatprep.subr.mxu0 0.0
      %1354 = vmatpush1.msra.mxu0 0.0
      %1355 = vmatprep.subr.mxu0 0.0
      %1356 = vmatpush1.msra.mxu0 0.0
      %1357 = vmatprep.subr.mxu0 0.0
      %1358 = vmatpush1.msra.mxu0 0.0
      %1359 = vmatprep.subr.mxu0 0.0
      %1360 = vmatpush1.msra.mxu0 0.0
      %1361 = vmatprep.subr.mxu0 0.0
      %1362 = vmatpush1.msra.mxu0 0.0
      %1363 = vmatprep.subr.mxu0 0.0
      %1364 = vmatpush1.msra.mxu0 0.0
      %1365 = vmatprep.subr.mxu0 0.0
      %1366 = vmatpush1.msra.mxu0 0.0
      %1367 = vmatprep.subr.mxu0 0.0
      %1368 = vmatpush1.msra.mxu0 0.0
      %1369 = vmatprep.subr.mxu0 0.0
      %1370 = vmatpush1.msra.mxu0 0.0
      %1371 = vmatprep.subr.mxu0 0.0
      %1372 = vmatpush1.msra.mxu0 0.0
      %1373 = vmatprep.subr.mxu0 0.0
      %1374 = vmatpush1.msra.mxu0 0.0
      %1375 = vmatprep.subr.mxu0 0.0
      %1376 = vmatpush1.msra.mxu0 0.0
      %1377 = vmatprep.subr.mxu0 0.0
      %1378 = vmatpush1.msra.mxu0 0.0
      %1379 = vmatprep.subr.mxu0 0.0
      %1380 = vmatpush1.msra.mxu0 0.0
      %1381 = vmatprep.subr.mxu0 0.0
      %1382 = vmatpush1.msra.mxu0 0.0
      %1383 = vmatprep.subr.mxu0 0.0
      %1384 = vmatpush1.msra.mxu0 0.0
      %1385 = vmatprep.subr.mxu0 0.0
      %1386 = vmatpush1.msra.mxu0 0.0
      %1387 = vmatprep.subr.mxu0 0.0
      %1388 = vmatpush1.msra.mxu0 0.0
      %1389 = vmatprep.subr.mxu0 0.0
      %1390 = vmatpush1.msra.mxu0 0.0
      %1391 = vmatprep.subr.mxu0 0.0
      %1392 = vmatpush1.msra.mxu0 0.0
      %1393 = vmatprep.subr.mxu0 0.0
      %1394 = vmatpush1.msra.mxu0 0.0
      %1395 = vmatprep.subr.mxu0 0.0
      %1396 = vmatpush1.msra.mxu0 0.0
      %1397 = vmatprep.subr.mxu0 0.0
      %1398 = vmatpush1.msra.mxu0 0.0
      %1399 = vmatprep.subr.mxu0 0.0
      %1400 = vmatpush1.msra.mxu0 0.0
      %1401 = vmatprep.mubr.f32.mxu0 0.0
      %1402 = vmatmul.mubr.f32.gmra.mrb[0].mxu0 %v1266
      %v1403 = vpop.f32.mrb[0].mxu0
      %v1404 = vadd.f32 %v1148, %v1403
      %v1405 = vpop.f32.mrb[0].mxu0
      %1406 = vmatprep.mubr.f32.mxu0 0.0
      %1407 = vmatmul.mubr.f32.gmra.mrb[0].mxu0 %v1269
      %v1408 = vpop.f32.mrb[0].mxu0
      %v1409 = vadd.f32 %v1153, %v1408
      %v1410 = vpop.f32.mrb[0].mxu0
      %1411 = vmatprep.mubr.f32.mxu0 0.0
      %1412 = vmatmul.mubr.f32.gmra.mrb[0].mxu0 %v1272
      %v1413 = vpop.f32.mrb[0].mxu0
      %v1414 = vadd.f32 %v1158, %v1413
      %v1415 = vpop.f32.mrb[0].mxu0
      %1416 = vmatprep.mubr.f32.mxu0 0.0
      %1417 = vmatmul.mubr.f32.gmra.mrb[0].mxu0 %v1275
      %v1418 = vpop.f32.mrb[0].mxu0
      %v1419 = vadd.f32 %v1163, %v1418
      %v1420 = vpop.f32.mrb[0].mxu0
      %1421 = vmatprep.mubr.f32.mxu0 0.0
      %1422 = vmatmul.mubr.f32.gmra.mrb[0].mxu0 %v1278
      %v1423 = vpop.f32.mrb[0].mxu0
      %v1424 = vadd.f32 %v1168, %v1423
      %v1425 = vpop.f32.mrb[0].mxu0
      %1426 = vmatprep.mubr.f32.mxu0 0.0
      %1427 = vmatmul.mubr.f32.gmra.mrb[0].mxu0 %v1281
      %v1428 = vpop.f32.mrb[0].mxu0
      %v1429 = vadd.f32 %v1173, %v1428
      %v1430 = vpop.f32.mrb[0].mxu0
      %1431 = vmatprep.mubr.f32.mxu0 0.0
      %1432 = vmatmul.mubr.f32.gmra.mrb[0].mxu0 %v1284
      %v1433 = vpop.f32.mrb[0].mxu0
      %v1434 = vadd.f32 %v1178, %v1433
      %v1435 = vpop.f32.mrb[0].mxu0
      %1436 = vmatprep.mubr.f32.mxu0 0.0
      %1437 = vmatmul.mubr.f32.gmra.mrb[0].mxu0 %v1287
      %v1438 = vpop.f32.mrb[0].mxu0
      %v1439 = vadd.f32 %v1183, %v1438
      %v1440 = vpop.f32.mrb[0].mxu0
      %1441 = vmatprep.mubr.f32.mxu0 0.0
      %1442 = vmatmul.mubr.f32.gmra.mrb[0].mxu0 %v1290
      %v1443 = vpop.f32.mrb[0].mxu0
      %v1444 = vadd.f32 %v1188, %v1443
      %v1445 = vpop.f32.mrb[0].mxu0
      %1446 = vmatprep.mubr.f32.mxu0 0.0
      %1447 = vmatmul.mubr.f32.gmra.mrb[0].mxu0 %v1293
      %v1448 = vpop.f32.mrb[0].mxu0
      %v1449 = vadd.f32 %v1193, %v1448
      %v1450 = vpop.f32.mrb[0].mxu0
      %1451 = vmatprep.mubr.f32.mxu0 0.0
      %1452 = vmatmul.mubr.f32.gmra.mrb[0].mxu0 %v1296
      %v1453 = vpop.f32.mrb[0].mxu0
      %v1454 = vadd.f32 %v1198, %v1453
      %v1455 = vpop.f32.mrb[0].mxu0
      %1456 = vmatprep.mubr.f32.mxu0 0.0
      %1457 = vmatmul.mubr.f32.gmra.mrb[0].mxu0 %v1299
      %v1458 = vpop.f32.mrb[0].mxu0
      %v1459 = vadd.f32 %v1203, %v1458
      %v1460 = vpop.f32.mrb[0].mxu0
      %1461 = vmatprep.mubr.f32.mxu0 0.0
      %1462 = vmatmul.mubr.f32.gmra.mrb[0].mxu0 %v1302
      %v1463 = vpop.f32.mrb[0].mxu0
      %v1464 = vadd.f32 %v1208, %v1463
      %v1465 = vpop.f32.mrb[0].mxu0
      %1466 = vmatprep.mubr.f32.mxu0 0.0
      %1467 = vmatmul.mubr.f32.gmra.mrb[0].mxu0 %v1305
      %v1468 = vpop.f32.mrb[0].mxu0
      %v1469 = vadd.f32 %v1213, %v1468
      %v1470 = vpop.f32.mrb[0].mxu0
      %1471 = vmatprep.mubr.f32.mxu0 0.0
      %1472 = vmatmul.mubr.f32.gmra.mrb[0].mxu0 %v1308
      %v1473 = vpop.f32.mrb[0].mxu0
      %v1474 = vadd.f32 %v1218, %v1473
      %v1475 = vpop.f32.mrb[0].mxu0
      %1476 = vmatprep.mubr.f32.mxu0 0.0
      %1477 = vmatmul.mubr.f32.gmra.mrb[0].mxu0 %v1311
      %v1478 = vpop.f32.mrb[0].mxu0
      %v1479 = vadd.f32 %v1223, %v1478
      %v1480 = vpop.f32.mrb[0].mxu0
      %1481 = vmatprep.mubr.f32.mxu0 0.0
      %1482 = vmatmul.mubr.f32.gmra.mrb[0].mxu0 %v1314
      %v1483 = vpop.f32.mrb[0].mxu0
      %v1484 = vadd.f32 %v1228, %v1483
      %v1485 = vpop.f32.mrb[0].mxu0
      %1486 = vmatprep.mubr.f32.mxu0 0.0
      %1487 = vmatmul.mubr.f32.gmra.mrb[0].mxu0 %v1317
      %v1488 = vpop.f32.mrb[0].mxu0
      %v1489 = vadd.f32 %v1233, %v1488
      %v1490 = vpop.f32.mrb[0].mxu0
      %1491 = vmatprep.mubr.f32.mxu0 0.0
      %1492 = vmatmul.mubr.f32.gmra.mrb[0].mxu0 %v1320
      %v1493 = vpop.f32.mrb[0].mxu0
      %v1494 = vadd.f32 %v1238, %v1493
      %v1495 = vpop.f32.mrb[0].mxu0
      %1496 = vmatprep.mubr.f32.mxu0 0.0
      %1497 = vmatmul.mubr.f32.gmra.mrb[0].mxu0 %v1323
      %v1498 = vpop.f32.mrb[0].mxu0
      %v1499 = vadd.f32 %v1243, %v1498
      %v1500 = vpop.f32.mrb[0].mxu0
      %1501 = vmatprep.mubr.f32.mxu0 0.0
      %1502 = vmatmul.mubr.f32.gmra.mrb[0].mxu0 %v1326
      %v1503 = vpop.f32.mrb[0].mxu0
      %v1504 = vadd.f32 %v1248, %v1503
      %v1505 = vpop.f32.mrb[0].mxu0
      %1506 = vmatprep.mubr.f32.mxu0 0.0
      %1507 = vmatmul.mubr.f32.gmra.mrb[0].mxu0 %v1329
      %v1508 = vpop.f32.mrb[0].mxu0
      %v1509 = vadd.f32 %v1253, %v1508
      %v1510 = vpop.f32.mrb[0].mxu0
      %1511 = vmatprep.mubr.f32.mxu0 0.0
      %1512 = vmatmul.mubr.f32.gmra.mrb[0].mxu0 %v1332
      %v1513 = vpop.f32.mrb[0].mxu0
      %v1514 = vadd.f32 %v1258, %v1513
      %v1515 = vpop.f32.mrb[0].mxu0
      %1516 = vmatprep.mubr.f32.mxu0 0.0
      %1517 = vmatmul.mubr.f32.gmra.mrb[0].mxu0 %v1335
      %v1518 = vpop.f32.mrb[0].mxu0
      %v1519 = vadd.f32 %v1263, %v1518
      %v1520 = vpop.f32.mrb[0].mxu0
      %1521 = vdwg.mxu0
      %v1522 = vld [vmem:[%s8] sm:$0xff]
      %v1523 = vld [vmem:[%s8 + $0x8] sm:$0xff]
      %v1524 = vld [vmem:[%s8 + $0x10] sm:$0xff]
      %v1525 = vld [vmem:[%s8 + $0x18] sm:$0xff]
      %v1526 = vld [vmem:[%s8 + $0x20] sm:$0xff]
      %v1527 = vld [vmem:[%s8 + $0x28] sm:$0xff]
      %v1528 = vld [vmem:[%s8 + $0x30] sm:$0xff]
      %v1529 = vld [vmem:[%s8 + $0x38] sm:$0xff]
      %v1530 = vld [vmem:[%s8 + $0x40] sm:$0xff]
      %v1531 = vld [vmem:[%s8 + $0x48] sm:$0xff]
      %v1532 = vld [vmem:[%s8 + $0x50] sm:$0xff]
      %v1533 = vld [vmem:[%s8 + $0x58] sm:$0xff]
      %v1534 = vld [vmem:[%s8 + $0x60] sm:$0xff]
      %v1535 = vld [vmem:[%s8 + $0x68] sm:$0xff]
      %v1536 = vld [vmem:[%s8 + $0x70] sm:$0xff]
      %v1537 = vld [vmem:[%s8 + $0x78] sm:$0xff]
      %v1538 = vld [vmem:[%s8 + $0x80] sm:$0xff]
      %v1539 = vld [vmem:[%s8 + $0x88] sm:$0xff]
      %v1540 = vld [vmem:[%s8 + $0x90] sm:$0xff]
      %v1541 = vld [vmem:[%s8 + $0x98] sm:$0xff]
      %v1542 = vld [vmem:[%s8 + $0xa0] sm:$0xff]
      %v1543 = vld [vmem:[%s8 + $0xa8] sm:$0xff]
      %v1544 = vld [vmem:[%s8 + $0xb0] sm:$0xff]
      %v1545 = vld [vmem:[%s8 + $0xb8] sm:$0xff]
      %v1546 = vld [vmem:[%s8 + $0xc0] sm:$0xff]
      %v1547 = vld [vmem:[%s8 + $0xc8] sm:$0xff]
      %v1548 = vld [vmem:[%s8 + $0xd0] sm:$0xff]
      %v1549 = vld [vmem:[%s8 + $0xd8] sm:$0xff]
      %v1550 = vld [vmem:[%s8 + $0xe0] sm:$0xff]
      %v1551 = vld [vmem:[%s8 + $0xe8] sm:$0xff]
      %v1552 = vld [vmem:[%s8 + $0xf0] sm:$0xff]
      %v1553 = vld [vmem:[%s8 + $0xf8] sm:$0xff]
      %v1554 = vld [vmem:[%s8 + $0x100] sm:$0xff]
      %v1555 = vld [vmem:[%s8 + $0x108] sm:$0xff]
      %v1556 = vld [vmem:[%s8 + $0x110] sm:$0xff]
      %v1557 = vld [vmem:[%s8 + $0x118] sm:$0xff]
      %v1558 = vld [vmem:[%s8 + $0x120] sm:$0xff]
      %v1559 = vld [vmem:[%s8 + $0x128] sm:$0xff]
      %v1560 = vld [vmem:[%s8 + $0x130] sm:$0xff]
      %v1561 = vld [vmem:[%s8 + $0x138] sm:$0xff]
      %v1562 = vld [vmem:[%s8 + $0x140] sm:$0xff]
      %v1563 = vld [vmem:[%s8 + $0x148] sm:$0xff]
      %v1564 = vld [vmem:[%s8 + $0x150] sm:$0xff]
      %v1565 = vld [vmem:[%s8 + $0x158] sm:$0xff]
      %v1566 = vld [vmem:[%s8 + $0x160] sm:$0xff]
      %v1567 = vld [vmem:[%s8 + $0x168] sm:$0xff]
      %v1568 = vld [vmem:[%s8 + $0x170] sm:$0xff]
      %v1569 = vld [vmem:[%s8 + $0x178] sm:$0xff]
      %v1570 = vld [vmem:[%s9] sm:$0xff]
      %v1571 = vld [vmem:[%s9 + $0x8] sm:$0xff]
      %v1572 = vld [vmem:[%s9 + $0x10] sm:$0xff]
      %v1573 = vld [vmem:[%s9 + $0x18] sm:$0xff]
      %v1574 = vld [vmem:[%s9 + $0x20] sm:$0xff]
      %v1575 = vld [vmem:[%s9 + $0x28] sm:$0xff]
      %v1576 = vld [vmem:[%s9 + $0x30] sm:$0xff]
      %v1577 = vld [vmem:[%s9 + $0x38] sm:$0xff]
      %v1578 = vld [vmem:[%s9 + $0x40] sm:$0xff]
      %v1579 = vld [vmem:[%s9 + $0x48] sm:$0xff]
      %v1580 = vld [vmem:[%s9 + $0x50] sm:$0xff]
      %v1581 = vld [vmem:[%s9 + $0x58] sm:$0xff]
      %v1582 = vld [vmem:[%s9 + $0x60] sm:$0xff]
      %v1583 = vld [vmem:[%s9 + $0x68] sm:$0xff]
      %v1584 = vld [vmem:[%s9 + $0x70] sm:$0xff]
      %v1585 = vld [vmem:[%s9 + $0x78] sm:$0xff]
      %v1586 = vld [vmem:[%s9 + $0x80] sm:$0xff]
      %v1587 = vld [vmem:[%s9 + $0x88] sm:$0xff]
      %v1588 = vld [vmem:[%s9 + $0x90] sm:$0xff]
      %v1589 = vld [vmem:[%s9 + $0x98] sm:$0xff]
      %v1590 = vld [vmem:[%s9 + $0xa0] sm:$0xff]
      %v1591 = vld [vmem:[%s9 + $0xa8] sm:$0xff]
      %v1592 = vld [vmem:[%s9 + $0xb0] sm:$0xff]
      %v1593 = vld [vmem:[%s9 + $0xb8] sm:$0xff]
      %1595 = vset.pattern.permute.xlu0 0
      %1596 = vperm.xlu0 %1595, %v1570
      %v1597 = vpop.permute.xlu0 %1596
      %1600 = vset.pattern.permute.xlu0 0
      %1601 = vperm.xlu0 %1600, %v1571
      %v1602 = vpop.permute.xlu0 %1601
      %1605 = vset.pattern.permute.xlu0 0
      %1606 = vperm.xlu0 %1605, %v1572
      %v1607 = vpop.permute.xlu0 %1606
      %1610 = vset.pattern.permute.xlu0 0
      %1611 = vperm.xlu0 %1610, %v1573
      %v1612 = vpop.permute.xlu0 %1611
      %1615 = vset.pattern.permute.xlu0 0
      %1616 = vperm.xlu0 %1615, %v1574
      %v1617 = vpop.permute.xlu0 %1616
      %1620 = vset.pattern.permute.xlu0 0
      %1621 = vperm.xlu0 %1620, %v1575
      %v1622 = vpop.permute.xlu0 %1621
      %1625 = vset.pattern.permute.xlu0 0
      %1626 = vperm.xlu0 %1625, %v1576
      %v1627 = vpop.permute.xlu0 %1626
      %1630 = vset.pattern.permute.xlu0 0
      %1631 = vperm.xlu0 %1630, %v1577
      %v1632 = vpop.permute.xlu0 %1631
      %1635 = vset.pattern.permute.xlu0 0
      %1636 = vperm.xlu0 %1635, %v1578
      %v1637 = vpop.permute.xlu0 %1636
      %1640 = vset.pattern.permute.xlu0 0
      %1641 = vperm.xlu0 %1640, %v1579
      %v1642 = vpop.permute.xlu0 %1641
      %1645 = vset.pattern.permute.xlu0 0
      %1646 = vperm.xlu0 %1645, %v1580
      %v1647 = vpop.permute.xlu0 %1646
      %1650 = vset.pattern.permute.xlu0 0
      %1651 = vperm.xlu0 %1650, %v1581
      %v1652 = vpop.permute.xlu0 %1651
      %1655 = vset.pattern.permute.xlu0 0
      %1656 = vperm.xlu0 %1655, %v1582
      %v1657 = vpop.permute.xlu0 %1656
      %1660 = vset.pattern.permute.xlu0 0
      %1661 = vperm.xlu0 %1660, %v1583
      %v1662 = vpop.permute.xlu0 %1661
      %1665 = vset.pattern.permute.xlu0 0
      %1666 = vperm.xlu0 %1665, %v1584
      %v1667 = vpop.permute.xlu0 %1666
      %1670 = vset.pattern.permute.xlu0 0
      %1671 = vperm.xlu0 %1670, %v1585
      %v1672 = vpop.permute.xlu0 %1671
      %1675 = vset.pattern.permute.xlu0 0
      %1676 = vperm.xlu0 %1675, %v1586
      %v1677 = vpop.permute.xlu0 %1676
      %1680 = vset.pattern.permute.xlu0 0
      %1681 = vperm.xlu0 %1680, %v1587
      %v1682 = vpop.permute.xlu0 %1681
      %1685 = vset.pattern.permute.xlu0 0
      %1686 = vperm.xlu0 %1685, %v1588
      %v1687 = vpop.permute.xlu0 %1686
      %1690 = vset.pattern.permute.xlu0 0
      %1691 = vperm.xlu0 %1690, %v1589
      %v1692 = vpop.permute.xlu0 %1691
      %1695 = vset.pattern.permute.xlu0 0
      %1696 = vperm.xlu0 %1695, %v1590
      %v1697 = vpop.permute.xlu0 %1696
      %1700 = vset.pattern.permute.xlu0 0
      %1701 = vperm.xlu0 %1700, %v1591
      %v1702 = vpop.permute.xlu0 %1701
      %1705 = vset.pattern.permute.xlu0 0
      %1706 = vperm.xlu0 %1705, %v1592
      %v1707 = vpop.permute.xlu0 %1706
      %1710 = vset.pattern.permute.xlu0 0
      %1711 = vperm.xlu0 %1710, %v1593
      %v1712 = vpop.permute.xlu0 %1711
      %v1715 = vsel %vm629, %v1523, 0
      %v1718 = vsel %vm629, %v1525, 0
      %v1721 = vsel %vm629, %v1527, 0
      %v1724 = vsel %vm629, %v1529, 0
      %v1727 = vsel %vm629, %v1531, 0
      %v1730 = vsel %vm629, %v1533, 0
      %v1733 = vsel %vm629, %v1535, 0
      %v1736 = vsel %vm629, %v1537, 0
      %v1739 = vsel %vm629, %v1539, 0
      %v1742 = vsel %vm629, %v1541, 0
      %v1745 = vsel %vm629, %v1543, 0
      %v1748 = vsel %vm629, %v1545, 0
      %v1751 = vsel %vm629, %v1547, 0
      %v1754 = vsel %vm629, %v1549, 0
      %v1757 = vsel %vm629, %v1551, 0
      %v1760 = vsel %vm629, %v1553, 0
      %v1763 = vsel %vm629, %v1555, 0
      %v1766 = vsel %vm629, %v1557, 0
      %v1769 = vsel %vm629, %v1559, 0
      %v1772 = vsel %vm629, %v1561, 0
      %v1775 = vsel %vm629, %v1563, 0
      %v1778 = vsel %vm629, %v1565, 0
      %v1781 = vsel %vm629, %v1567, 0
      %v1784 = vsel %vm629, %v1569, 0
      %1786 = vmatprep.subr.mxu0 0.0
      %1787 = vmatpush1.msra.mxu0 %v1404
      %1788 = vmatprep.subr.mxu0 0.0
      %1789 = vmatpush1.msra.mxu0 %v1409
      %1790 = vmatprep.subr.mxu0 0.0
      %1791 = vmatpush1.msra.mxu0 %v1414
      %1792 = vmatprep.subr.mxu0 0.0
      %1793 = vmatpush1.msra.mxu0 %v1419
      %1794 = vmatprep.subr.mxu0 0.0
      %1795 = vmatpush1.msra.mxu0 %v1424
      %1796 = vmatprep.subr.mxu0 0.0
      %1797 = vmatpush1.msra.mxu0 %v1429
      %1798 = vmatprep.subr.mxu0 0.0
      %1799 = vmatpush1.msra.mxu0 %v1434
      %1800 = vmatprep.subr.mxu0 0.0
      %1801 = vmatpush1.msra.mxu0 %v1439
      %1802 = vmatprep.subr.mxu0 0.0
      %1803 = vmatpush1.msra.mxu0 %v1444
      %1804 = vmatprep.subr.mxu0 0.0
      %1805 = vmatpush1.msra.mxu0 %v1449
      %1806 = vmatprep.subr.mxu0 0.0
      %1807 = vmatpush1.msra.mxu0 %v1454
      %1808 = vmatprep.subr.mxu0 0.0
      %1809 = vmatpush1.msra.mxu0 %v1459
      %1810 = vmatprep.subr.mxu0 0.0
      %1811 = vmatpush1.msra.mxu0 %v1464
      %1812 = vmatprep.subr.mxu0 0.0
      %1813 = vmatpush1.msra.mxu0 %v1469
      %1814 = vmatprep.subr.mxu0 0.0
      %1815 = vmatpush1.msra.mxu0 %v1474
      %1816 = vmatprep.subr.mxu0 0.0
      %1817 = vmatpush1.msra.mxu0 %v1479
      %1818 = vmatprep.subr.mxu0 0.0
      %1819 = vmatpush1.msra.mxu0 %v1484
      %1820 = vmatprep.subr.mxu0 0.0
      %1821 = vmatpush1.msra.mxu0 %v1489
      %1822 = vmatprep.subr.mxu0 0.0
      %1823 = vmatpush1.msra.mxu0 %v1494
      %1824 = vmatprep.subr.mxu0 0.0
      %1825 = vmatpush1.msra.mxu0 %v1499
      %1826 = vmatprep.subr.mxu0 0.0
      %1827 = vmatpush1.msra.mxu0 %v1504
      %1828 = vmatprep.subr.mxu0 0.0
      %1829 = vmatpush1.msra.mxu0 %v1509
      %1830 = vmatprep.subr.mxu0 0.0
      %1831 = vmatpush1.msra.mxu0 %v1514
      %1832 = vmatprep.subr.mxu0 0.0
      %1833 = vmatpush1.msra.mxu0 %v1519
      %1834 = vmatprep.subr.mxu0 0.0
      %1835 = vmatpush1.msra.mxu0 0.0
      %1836 = vmatprep.subr.mxu0 0.0
      %1837 = vmatpush1.msra.mxu0 0.0
      %1838 = vmatprep.subr.mxu0 0.0
      %1839 = vmatpush1.msra.mxu0 0.0
      %1840 = vmatprep.subr.mxu0 0.0
      %1841 = vmatpush1.msra.mxu0 0.0
      %1842 = vmatprep.subr.mxu0 0.0
      %1843 = vmatpush1.msra.mxu0 0.0
      %1844 = vmatprep.subr.mxu0 0.0
      %1845 = vmatpush1.msra.mxu0 0.0
      %1846 = vmatprep.subr.mxu0 0.0
      %1847 = vmatpush1.msra.mxu0 0.0
      %1848 = vmatprep.subr.mxu0 0.0
      %1849 = vmatpush1.msra.mxu0 0.0
      %1850 = vmatprep.mubr.f32.mxu0 %v1715
      %1851 = vmatmul.mubr.f32.gmra.mrb[0].mxu0 %v1522
      %v1852 = vpop.f32.mrb[0].mxu0
      %v1853 = vadd.f32 %v1597, %v1852
      %v1854 = vpop.f32.mrb[0].mxu0
      %1855 = vmatprep.mubr.f32.mxu0 %v1718
      %1856 = vmatmul.mubr.f32.gmra.mrb[0].mxu0 %v1524
      %v1857 = vpop.f32.mrb[0].mxu0
      %v1858 = vadd.f32 %v1602, %v1857
      %v1859 = vpop.f32.mrb[0].mxu0
      %1860 = vmatprep.mubr.f32.mxu0 %v1721
      %1861 = vmatmul.mubr.f32.gmra.mrb[0].mxu0 %v1526
      %v1862 = vpop.f32.mrb[0].mxu0
      %v1863 = vadd.f32 %v1607, %v1862
      %v1864 = vpop.f32.mrb[0].mxu0
      %1865 = vmatprep.mubr.f32.mxu0 %v1724
      %1866 = vmatmul.mubr.f32.gmra.mrb[0].mxu0 %v1528
      %v1867 = vpop.f32.mrb[0].mxu0
      %v1868 = vadd.f32 %v1612, %v1867
      %v1869 = vpop.f32.mrb[0].mxu0
      %1870 = vmatprep.mubr.f32.mxu0 %v1727
      %1871 = vmatmul.mubr.f32.gmra.mrb[0].mxu0 %v1530
      %v1872 = vpop.f32.mrb[0].mxu0
      %v1873 = vadd.f32 %v1617, %v1872
      %v1874 = vpop.f32.mrb[0].mxu0
      %1875 = vmatprep.mubr.f32.mxu0 %v1730
      %1876 = vmatmul.mubr.f32.gmra.mrb[0].mxu0 %v1532
      %v1877 = vpop.f32.mrb[0].mxu0
      %v1878 = vadd.f32 %v1622, %v1877
      %v1879 = vpop.f32.mrb[0].mxu0
      %1880 = vmatprep.mubr.f32.mxu0 %v1733
      %1881 = vmatmul.mubr.f32.gmra.mrb[0].mxu0 %v1534
      %v1882 = vpop.f32.mrb[0].mxu0
      %v1883 = vadd.f32 %v1627, %v1882
      %v1884 = vpop.f32.mrb[0].mxu0
      %1885 = vmatprep.mubr.f32.mxu0 %v1736
      %1886 = vmatmul.mubr.f32.gmra.mrb[0].mxu0 %v1536
      %v1887 = vpop.f32.mrb[0].mxu0
      %v1888 = vadd.f32 %v1632, %v1887
      %v1889 = vpop.f32.mrb[0].mxu0
      %1890 = vmatprep.mubr.f32.mxu0 %v1739
      %1891 = vmatmul.mubr.f32.gmra.mrb[0].mxu0 %v1538
      %v1892 = vpop.f32.mrb[0].mxu0
      %v1893 = vadd.f32 %v1637, %v1892
      %v1894 = vpop.f32.mrb[0].mxu0
      %1895 = vmatprep.mubr.f32.mxu0 %v1742
      %1896 = vmatmul.mubr.f32.gmra.mrb[0].mxu0 %v1540
      %v1897 = vpop.f32.mrb[0].mxu0
      %v1898 = vadd.f32 %v1642, %v1897
      %v1899 = vpop.f32.mrb[0].mxu0
      %1900 = vmatprep.mubr.f32.mxu0 %v1745
      %1901 = vmatmul.mubr.f32.gmra.mrb[0].mxu0 %v1542
      %v1902 = vpop.f32.mrb[0].mxu0
      %v1903 = vadd.f32 %v1647, %v1902
      %v1904 = vpop.f32.mrb[0].mxu0
      %1905 = vmatprep.mubr.f32.mxu0 %v1748
      %1906 = vmatmul.mubr.f32.gmra.mrb[0].mxu0 %v1544
      %v1907 = vpop.f32.mrb[0].mxu0
      %v1908 = vadd.f32 %v1652, %v1907
      %v1909 = vpop.f32.mrb[0].mxu0
      %1910 = vmatprep.mubr.f32.mxu0 %v1751
      %1911 = vmatmul.mubr.f32.gmra.mrb[0].mxu0 %v1546
      %v1912 = vpop.f32.mrb[0].mxu0
      %v1913 = vadd.f32 %v1657, %v1912
      %v1914 = vpop.f32.mrb[0].mxu0
      %1915 = vmatprep.mubr.f32.mxu0 %v1754
      %1916 = vmatmul.mubr.f32.gmra.mrb[0].mxu0 %v1548
      %v1917 = vpop.f32.mrb[0].mxu0
      %v1918 = vadd.f32 %v1662, %v1917
      %v1919 = vpop.f32.mrb[0].mxu0
      %1920 = vmatprep.mubr.f32.mxu0 %v1757
      %1921 = vmatmul.mubr.f32.gmra.mrb[0].mxu0 %v1550
      %v1922 = vpop.f32.mrb[0].mxu0
      %v1923 = vadd.f32 %v1667, %v1922
      %v1924 = vpop.f32.mrb[0].mxu0
      %1925 = vmatprep.mubr.f32.mxu0 %v1760
      %1926 = vmatmul.mubr.f32.gmra.mrb[0].mxu0 %v1552
      %v1927 = vpop.f32.mrb[0].mxu0
      %v1928 = vadd.f32 %v1672, %v1927
      %v1929 = vpop.f32.mrb[0].mxu0
      %1930 = vmatprep.mubr.f32.mxu0 %v1763
      %1931 = vmatmul.mubr.f32.gmra.mrb[0].mxu0 %v1554
      %v1932 = vpop.f32.mrb[0].mxu0
      %v1933 = vadd.f32 %v1677, %v1932
      %v1934 = vpop.f32.mrb[0].mxu0
      %1935 = vmatprep.mubr.f32.mxu0 %v1766
      %1936 = vmatmul.mubr.f32.gmra.mrb[0].mxu0 %v1556
      %v1937 = vpop.f32.mrb[0].mxu0
      %v1938 = vadd.f32 %v1682, %v1937
      %v1939 = vpop.f32.mrb[0].mxu0
      %1940 = vmatprep.mubr.f32.mxu0 %v1769
      %1941 = vmatmul.mubr.f32.gmra.mrb[0].mxu0 %v1558
      %v1942 = vpop.f32.mrb[0].mxu0
      %v1943 = vadd.f32 %v1687, %v1942
      %v1944 = vpop.f32.mrb[0].mxu0
      %1945 = vmatprep.mubr.f32.mxu0 %v1772
      %1946 = vmatmul.mubr.f32.gmra.mrb[0].mxu0 %v1560
      %v1947 = vpop.f32.mrb[0].mxu0
      %v1948 = vadd.f32 %v1692, %v1947
      %v1949 = vpop.f32.mrb[0].mxu0
      %1950 = vmatprep.mubr.f32.mxu0 %v1775
      %1951 = vmatmul.mubr.f32.gmra.mrb[0].mxu0 %v1562
      %v1952 = vpop.f32.mrb[0].mxu0
      %v1953 = vadd.f32 %v1697, %v1952
      %v1954 = vpop.f32.mrb[0].mxu0
      %1955 = vmatprep.mubr.f32.mxu0 %v1778
      %1956 = vmatmul.mubr.f32.gmra.mrb[0].mxu0 %v1564
      %v1957 = vpop.f32.mrb[0].mxu0
      %v1958 = vadd.f32 %v1702, %v1957
      %v1959 = vpop.f32.mrb[0].mxu0
      %1960 = vmatprep.mubr.f32.mxu0 %v1781
      %1961 = vmatmul.mubr.f32.gmra.mrb[0].mxu0 %v1566
      %v1962 = vpop.f32.mrb[0].mxu0
      %v1963 = vadd.f32 %v1707, %v1962
      %v1964 = vpop.f32.mrb[0].mxu0
      %1965 = vmatprep.mubr.f32.mxu0 %v1784
      %1966 = vmatmul.mubr.f32.gmra.mrb[0].mxu0 %v1568
      %v1967 = vpop.f32.mrb[0].mxu0
      %v1968 = vadd.f32 %v1712, %v1967
      %v1969 = vpop.f32.mrb[0].mxu0
      %1970 = vdwg.mxu0
      %1971 = vxpose.xlu0.b32.start [1/16] %v1853, 128
      %1972 = vxpose.xlu0.b32.cont [2/16] %v1858, 128
      %1973 = vxpose.xlu0.b32.cont [3/16] %v1863, 128
      %1974 = vxpose.xlu0.b32.cont [4/16] %v1868, 128
      %1975 = vxpose.xlu0.b32.cont [5/16] %v1873, 128
      %1976 = vxpose.xlu0.b32.cont [6/16] %v1878, 128
      %1977 = vxpose.xlu0.b32.cont [7/16] %v1883, 128
      %1978 = vxpose.xlu0.b32.cont [8/16] %v1888, 128
      %1979 = vxpose.xlu0.b32.cont [9/16] 0.0, 128
      %1980 = vxpose.xlu0.b32.cont [10/16] 0.0, 128
      %1981 = vxpose.xlu0.b32.cont [11/16] 0.0, 128
      %1982 = vxpose.xlu0.b32.cont [12/16] 0.0, 128
      %1983 = vxpose.xlu0.b32.cont [13/16] 0.0, 128
      %1984 = vxpose.xlu0.b32.cont [14/16] 0.0, 128
      %1985 = vxpose.xlu0.b32.cont [15/16] 0.0, 128
      %1986 = vxpose.xlu0.b32.end [16/16] 0.0, 128
      %v1987 = vpop.trf.xlu0
      %v1988 = vpop.trf.xlu0
      %v1989 = vpop.trf.xlu0
      %v1990 = vpop.trf.xlu0
      %v1991 = vpop.trf.xlu0
      %v1992 = vpop.trf.xlu0
      %v1993 = vpop.trf.xlu0
      %v1994 = vpop.trf.xlu0
      %v1995 = vpop.trf.xlu0
      %v1996 = vpop.trf.xlu0
      %v1997 = vpop.trf.xlu0
      %v1998 = vpop.trf.xlu0
      %v1999 = vpop.trf.xlu0
      %v2000 = vpop.trf.xlu0
      %v2001 = vpop.trf.xlu0
      %v2002 = vpop.trf.xlu0
      %v2004 = vsel %vm629, %v1987, 0
      %v2007 = vsel %vm629, %v1988, 0
      %2009 = vmatprep.subr.mxu0 0.0
      %2010 = vmatpush1.msra.mxu0 %v1893
      %2011 = vmatprep.subr.mxu0 0.0
      %2012 = vmatpush1.msra.mxu0 %v1898
      %2013 = vmatprep.subr.mxu0 0.0
      %2014 = vmatpush1.msra.mxu0 %v1903
      %2015 = vmatprep.subr.mxu0 0.0
      %2016 = vmatpush1.msra.mxu0 %v1908
      %2017 = vmatprep.subr.mxu0 0.0
      %2018 = vmatpush1.msra.mxu0 %v1913
      %2019 = vmatprep.subr.mxu0 0.0
      %2020 = vmatpush1.msra.mxu0 %v1918
      %2021 = vmatprep.subr.mxu0 0.0
      %2022 = vmatpush1.msra.mxu0 %v1923
      %2023 = vmatprep.subr.mxu0 0.0
      %2024 = vmatpush1.msra.mxu0 %v1928
      %2025 = vmatprep.subr.mxu0 0.0
      %2026 = vmatpush1.msra.mxu0 0.0
      %2027 = vmatprep.subr.mxu0 0.0
      %2028 = vmatpush1.msra.mxu0 0.0
      %2029 = vmatprep.subr.mxu0 0.0
      %2030 = vmatpush1.msra.mxu0 0.0
      %2031 = vmatprep.subr.mxu0 0.0
      %2032 = vmatpush1.msra.mxu0 0.0
      %2033 = vmatprep.subr.mxu0 0.0
      %2034 = vmatpush1.msra.mxu0 0.0
      %2035 = vmatprep.subr.mxu0 0.0
      %2036 = vmatpush1.msra.mxu0 0.0
      %2037 = vmatprep.subr.mxu0 0.0
      %2038 = vmatpush1.msra.mxu0 0.0
      %2039 = vmatprep.subr.mxu0 0.0
      %2040 = vmatpush1.msra.mxu0 0.0
      %2041 = vmatprep.subr.mxu0 0.0
      %2042 = vmatpush1.msra.mxu0 0.0
      %2043 = vmatprep.subr.mxu0 0.0
      %2044 = vmatpush1.msra.mxu0 0.0
      %2045 = vmatprep.subr.mxu0 0.0
      %2046 = vmatpush1.msra.mxu0 0.0
      %2047 = vmatprep.subr.mxu0 0.0
      %2048 = vmatpush1.msra.mxu0 0.0
      %2049 = vmatprep.subr.mxu0 0.0
      %2050 = vmatpush1.msra.mxu0 0.0
      %2051 = vmatprep.subr.mxu0 0.0
      %2052 = vmatpush1.msra.mxu0 0.0
      %2053 = vmatprep.subr.mxu0 0.0
      %2054 = vmatpush1.msra.mxu0 0.0
      %2055 = vmatprep.subr.mxu0 0.0
      %2056 = vmatpush1.msra.mxu0 0.0
      %2057 = vmatprep.subr.mxu0 0.0
      %2058 = vmatpush1.msra.mxu0 0.0
      %2059 = vmatprep.subr.mxu0 0.0
      %2060 = vmatpush1.msra.mxu0 0.0
      %2061 = vmatprep.subr.mxu0 0.0
      %2062 = vmatpush1.msra.mxu0 0.0
      %2063 = vmatprep.subr.mxu0 0.0
      %2064 = vmatpush1.msra.mxu0 0.0
      %2065 = vmatprep.subr.mxu0 0.0
      %2066 = vmatpush1.msra.mxu0 0.0
      %2067 = vmatprep.subr.mxu0 0.0
      %2068 = vmatpush1.msra.mxu0 0.0
      %2069 = vmatprep.subr.mxu0 0.0
      %2070 = vmatpush1.msra.mxu0 0.0
      %2071 = vmatprep.subr.mxu0 0.0
      %2072 = vmatpush1.msra.mxu0 0.0
      %2073 = vmatprep.mubr.f32.mxu0 0.0
      %2074 = vmatmul.mubr.f32.gmra.mrb[0].mxu0 %v2004
      %v2075 = vpop.f32.mrb[0].mxu0
      %v2076 = vadd.f32 0.0, %v2075
      %v2077 = vpop.f32.mrb[0].mxu0
      %2078 = vmatprep.mubr.f32.mxu0 0.0
      %2079 = vmatmul.mubr.f32.gmra.mrb[0].mxu0 %v2007
      %v2080 = vpop.f32.mrb[0].mxu0
      %v2081 = vadd.f32 0.0, %v2080
      %v2082 = vpop.f32.mrb[0].mxu0
      %2083 = vdwg.mxu0
      %v2084 = vmul.f32 %v2076, 0.125
      %v2085 = vmul.f32 %v2081, 0.125
      %v2086 = vsel %vm872, %v2084, -inf
      %2087 = vmax.xlane.f32.xlu0 %v2086
      %v2088 = vpop.xlane.xlu0 %2087
      %v2089 = vsel %vm872, %v2085, -inf
      %2090 = vmax.xlane.f32.xlu0 %v2089
      %v2091 = vpop.xlane.xlu0 %2090
      %v2092 = vsub.f32 %v2084, %v2088
      %v2093 = vsub.f32 %v2085, %v2091
      %v2094 = vmul.f32 %v2092, 1.442695
      %v2095 = vpow.pop %v2094
      %v2096 = vmul.f32 %v2093, 1.442695
      %v2097 = vpow.pop %v2096
      %v2098 = vsel %vm872, %v2095, 0.0
      %2099 = vadd.xlane.f32.xlu0 %v2098
      %v2100 = vpop.xlane.xlu0 %2099
      %v2101 = vsel %vm872, %v2097, 0.0
      %2102 = vadd.xlane.f32.xlu0 %v2101
      %v2103 = vpop.xlane.xlu0 %2102
      %v2104 = vrcp.pop %v2100
      %v2105 = vmul.f32 %v2095, %v2104
      %v2106 = vrcp.pop %v2103
      %v2107 = vmul.f32 %v2097, %v2106
      %v2109 = vsel %vm872, %v1933, 0
      %v2112 = vsel %vm872, %v1938, 0
      %v2115 = vsel %vm872, %v1943, 0
      %v2118 = vsel %vm872, %v1948, 0
      %v2121 = vsel %vm872, %v1953, 0
      %v2124 = vsel %vm872, %v1958, 0
      %v2127 = vsel %vm872, %v1963, 0
      %v2130 = vsel %vm872, %v1968, 0
      %v2133 = vsel %vm872, %v2105, 0
      %v2136 = vsel %vm872, %v2107, 0
      %2138 = vmatprep.subr.mxu0 0.0
      %2139 = vmatpush1.xpose.msra.mxu0 %v2133
      %2140 = vmatprep.subr.mxu0 0.0
      %2141 = vmatpush1.xpose.msra.mxu0 %v2136
      %2142 = vmatprep.subr.mxu0 0.0
      %2143 = vmatpush1.xpose.msra.mxu0 0.0
      %2144 = vmatprep.subr.mxu0 0.0
      %2145 = vmatpush1.xpose.msra.mxu0 0.0
      %2146 = vmatprep.subr.mxu0 0.0
      %2147 = vmatpush1.xpose.msra.mxu0 0.0
      %2148 = vmatprep.subr.mxu0 0.0
      %2149 = vmatpush1.xpose.msra.mxu0 0.0
      %2150 = vmatprep.subr.mxu0 0.0
      %2151 = vmatpush1.xpose.msra.mxu0 0.0
      %2152 = vmatprep.subr.mxu0 0.0
      %2153 = vmatpush1.xpose.msra.mxu0 0.0
      %2154 = vmatprep.subr.mxu0 0.0
      %2155 = vmatpush1.xpose.msra.mxu0 0.0
      %2156 = vmatprep.subr.mxu0 0.0
      %2157 = vmatpush1.xpose.msra.mxu0 0.0
      %2158 = vmatprep.subr.mxu0 0.0
      %2159 = vmatpush1.xpose.msra.mxu0 0.0
      %2160 = vmatprep.subr.mxu0 0.0
      %2161 = vmatpush1.xpose.msra.mxu0 0.0
      %2162 = vmatprep.subr.mxu0 0.0
      %2163 = vmatpush1.xpose.msra.mxu0 0.0
      %2164 = vmatprep.subr.mxu0 0.0
      %2165 = vmatpush1.xpose.msra.mxu0 0.0
      %2166 = vmatprep.subr.mxu0 0.0
      %2167 = vmatpush1.xpose.msra.mxu0 0.0
      %2168 = vmatprep.subr.mxu0 0.0
      %2169 = vmatpush1.xpose.msra.mxu0 0.0
      %2170 = vmatprep.subr.mxu0 0.0
      %2171 = vmatpush1.xpose.msra.mxu0 0.0
      %2172 = vmatprep.subr.mxu0 0.0
      %2173 = vmatpush1.xpose.msra.mxu0 0.0
      %2174 = vmatprep.subr.mxu0 0.0
      %2175 = vmatpush1.xpose.msra.mxu0 0.0
      %2176 = vmatprep.subr.mxu0 0.0
      %2177 = vmatpush1.xpose.msra.mxu0 0.0
      %2178 = vmatprep.subr.mxu0 0.0
      %2179 = vmatpush1.xpose.msra.mxu0 0.0
      %2180 = vmatprep.subr.mxu0 0.0
      %2181 = vmatpush1.xpose.msra.mxu0 0.0
      %2182 = vmatprep.subr.mxu0 0.0
      %2183 = vmatpush1.xpose.msra.mxu0 0.0
      %2184 = vmatprep.subr.mxu0 0.0
      %2185 = vmatpush1.xpose.msra.mxu0 0.0
      %2186 = vmatprep.subr.mxu0 0.0
      %2187 = vmatpush1.xpose.msra.mxu0 0.0
      %2188 = vmatprep.subr.mxu0 0.0
      %2189 = vmatpush1.xpose.msra.mxu0 0.0
      %2190 = vmatprep.subr.mxu0 0.0
      %2191 = vmatpush1.xpose.msra.mxu0 0.0
      %2192 = vmatprep.subr.mxu0 0.0
      %2193 = vmatpush1.xpose.msra.mxu0 0.0
      %2194 = vmatprep.subr.mxu0 0.0
      %2195 = vmatpush1.xpose.msra.mxu0 0.0
      %2196 = vmatprep.subr.mxu0 0.0
      %2197 = vmatpush1.xpose.msra.mxu0 0.0
      %2198 = vmatprep.subr.mxu0 0.0
      %2199 = vmatpush1.xpose.msra.mxu0 0.0
      %2200 = vmatprep.subr.mxu0 0.0
      %2201 = vmatpush1.xpose.msra.mxu0 0.0
      %2202 = vmatprep.mubr.f32.mxu0 0.0
      %2203 = vmatmul.mubr.f32.gmra.mrb[0].mxu0 %v2109
      %v2204 = vpop.f32.mrb[0].mxu0
      %v2205 = vadd.f32 0.0, %v2204
      %v2206 = vpop.f32.mrb[0].mxu0
      %2207 = vmatprep.mubr.f32.mxu0 0.0
      %2208 = vmatmul.mubr.f32.gmra.mrb[0].mxu0 %v2112
      %v2209 = vpop.f32.mrb[0].mxu0
      %v2210 = vadd.f32 0.0, %v2209
      %v2211 = vpop.f32.mrb[0].mxu0
      %2212 = vmatprep.mubr.f32.mxu0 0.0
      %2213 = vmatmul.mubr.f32.gmra.mrb[0].mxu0 %v2115
      %v2214 = vpop.f32.mrb[0].mxu0
      %v2215 = vadd.f32 0.0, %v2214
      %v2216 = vpop.f32.mrb[0].mxu0
      %2217 = vmatprep.mubr.f32.mxu0 0.0
      %2218 = vmatmul.mubr.f32.gmra.mrb[0].mxu0 %v2118
      %v2219 = vpop.f32.mrb[0].mxu0
      %v2220 = vadd.f32 0.0, %v2219
      %v2221 = vpop.f32.mrb[0].mxu0
      %2222 = vmatprep.mubr.f32.mxu0 0.0
      %2223 = vmatmul.mubr.f32.gmra.mrb[0].mxu0 %v2121
      %v2224 = vpop.f32.mrb[0].mxu0
      %v2225 = vadd.f32 0.0, %v2224
      %v2226 = vpop.f32.mrb[0].mxu0
      %2227 = vmatprep.mubr.f32.mxu0 0.0
      %2228 = vmatmul.mubr.f32.gmra.mrb[0].mxu0 %v2124
      %v2229 = vpop.f32.mrb[0].mxu0
      %v2230 = vadd.f32 0.0, %v2229
      %v2231 = vpop.f32.mrb[0].mxu0
      %2232 = vmatprep.mubr.f32.mxu0 0.0
      %2233 = vmatmul.mubr.f32.gmra.mrb[0].mxu0 %v2127
      %v2234 = vpop.f32.mrb[0].mxu0
      %v2235 = vadd.f32 0.0, %v2234
      %v2236 = vpop.f32.mrb[0].mxu0
      %2237 = vmatprep.mubr.f32.mxu0 0.0
      %2238 = vmatmul.mubr.f32.gmra.mrb[0].mxu0 %v2130
      %v2239 = vpop.f32.mrb[0].mxu0
      %v2240 = vadd.f32 0.0, %v2239
      %v2241 = vpop.f32.mrb[0].mxu0
      %2242 = vdwg.mxu0
      %v2243 = vld [vmem:[%s10] sm:$0xff]
      %v2244 = vld [vmem:[%s10 + $0x8] sm:$0xff]
      %v2245 = vld [vmem:[%s10 + $0x10] sm:$0xff]
      %v2246 = vld [vmem:[%s10 + $0x18] sm:$0xff]
      %v2247 = vld [vmem:[%s10 + $0x20] sm:$0xff]
      %v2248 = vld [vmem:[%s10 + $0x28] sm:$0xff]
      %v2249 = vld [vmem:[%s10 + $0x30] sm:$0xff]
      %v2250 = vld [vmem:[%s10 + $0x38] sm:$0xff]
      %v2251 = vld [vmem:[%s11] sm:$0xff]
      %v2252 = vld [vmem:[%s11 + $0x8] sm:$0xff]
      %v2253 = vld [vmem:[%s11 + $0x10] sm:$0xff]
      %v2254 = vld [vmem:[%s11 + $0x18] sm:$0xff]
      %v2255 = vld [vmem:[%s11 + $0x20] sm:$0xff]
      %v2256 = vld [vmem:[%s11 + $0x28] sm:$0xff]
      %v2257 = vld [vmem:[%s11 + $0x30] sm:$0xff]
      %v2258 = vld [vmem:[%s11 + $0x38] sm:$0xff]
      %2260 = vset.pattern.permute.xlu0 0
      %2261 = vperm.xlu0 %2260, %v2251
      %v2262 = vpop.permute.xlu0 %2261
      %2265 = vset.pattern.permute.xlu0 0
      %2266 = vperm.xlu0 %2265, %v2252
      %v2267 = vpop.permute.xlu0 %2266
      %2270 = vset.pattern.permute.xlu0 0
      %2271 = vperm.xlu0 %2270, %v2253
      %v2272 = vpop.permute.xlu0 %2271
      %2275 = vset.pattern.permute.xlu0 0
      %2276 = vperm.xlu0 %2275, %v2254
      %v2277 = vpop.permute.xlu0 %2276
      %2280 = vset.pattern.permute.xlu0 0
      %2281 = vperm.xlu0 %2280, %v2255
      %v2282 = vpop.permute.xlu0 %2281
      %2285 = vset.pattern.permute.xlu0 0
      %2286 = vperm.xlu0 %2285, %v2256
      %v2287 = vpop.permute.xlu0 %2286
      %2290 = vset.pattern.permute.xlu0 0
      %2291 = vperm.xlu0 %2290, %v2257
      %v2292 = vpop.permute.xlu0 %2291
      %2295 = vset.pattern.permute.xlu0 0
      %2296 = vperm.xlu0 %2295, %v2258
      %v2297 = vpop.permute.xlu0 %2296
      %v2300 = vsel %vm629, %v2243, 0
      %v2303 = vsel %vm629, %v2244, 0
      %v2306 = vsel %vm629, %v2245, 0
      %v2309 = vsel %vm629, %v2246, 0
      %v2312 = vsel %vm629, %v2247, 0
      %v2315 = vsel %vm629, %v2248, 0
      %v2318 = vsel %vm629, %v2249, 0
      %v2321 = vsel %vm629, %v2250, 0
      %2323 = vmatprep.subr.mxu0 0.0
      %2324 = vmatpush1.msra.mxu0 %v2205
      %2325 = vmatprep.subr.mxu0 0.0
      %2326 = vmatpush1.msra.mxu0 %v2210
      %2327 = vmatprep.subr.mxu0 0.0
      %2328 = vmatpush1.msra.mxu0 %v2215
      %2329 = vmatprep.subr.mxu0 0.0
      %2330 = vmatpush1.msra.mxu0 %v2220
      %2331 = vmatprep.subr.mxu0 0.0
      %2332 = vmatpush1.msra.mxu0 %v2225
      %2333 = vmatprep.subr.mxu0 0.0
      %2334 = vmatpush1.msra.mxu0 %v2230
      %2335 = vmatprep.subr.mxu0 0.0
      %2336 = vmatpush1.msra.mxu0 %v2235
      %2337 = vmatprep.subr.mxu0 0.0
      %2338 = vmatpush1.msra.mxu0 %v2240
      %2339 = vmatprep.subr.mxu0 0.0
      %2340 = vmatpush1.msra.mxu0 0.0
      %2341 = vmatprep.subr.mxu0 0.0
      %2342 = vmatpush1.msra.mxu0 0.0
      %2343 = vmatprep.subr.mxu0 0.0
      %2344 = vmatpush1.msra.mxu0 0.0
      %2345 = vmatprep.subr.mxu0 0.0
      %2346 = vmatpush1.msra.mxu0 0.0
      %2347 = vmatprep.subr.mxu0 0.0
      %2348 = vmatpush1.msra.mxu0 0.0
      %2349 = vmatprep.subr.mxu0 0.0
      %2350 = vmatpush1.msra.mxu0 0.0
      %2351 = vmatprep.subr.mxu0 0.0
      %2352 = vmatpush1.msra.mxu0 0.0
      %2353 = vmatprep.subr.mxu0 0.0
      %2354 = vmatpush1.msra.mxu0 0.0
      %2355 = vmatprep.subr.mxu0 0.0
      %2356 = vmatpush1.msra.mxu0 0.0
      %2357 = vmatprep.subr.mxu0 0.0
      %2358 = vmatpush1.msra.mxu0 0.0
      %2359 = vmatprep.subr.mxu0 0.0
      %2360 = vmatpush1.msra.mxu0 0.0
      %2361 = vmatprep.subr.mxu0 0.0
      %2362 = vmatpush1.msra.mxu0 0.0
      %2363 = vmatprep.subr.mxu0 0.0
      %2364 = vmatpush1.msra.mxu0 0.0
      %2365 = vmatprep.subr.mxu0 0.0
      %2366 = vmatpush1.msra.mxu0 0.0
      %2367 = vmatprep.subr.mxu0 0.0
      %2368 = vmatpush1.msra.mxu0 0.0
      %2369 = vmatprep.subr.mxu0 0.0
      %2370 = vmatpush1.msra.mxu0 0.0
      %2371 = vmatprep.subr.mxu0 0.0
      %2372 = vmatpush1.msra.mxu0 0.0
      %2373 = vmatprep.subr.mxu0 0.0
      %2374 = vmatpush1.msra.mxu0 0.0
      %2375 = vmatprep.subr.mxu0 0.0
      %2376 = vmatpush1.msra.mxu0 0.0
      %2377 = vmatprep.subr.mxu0 0.0
      %2378 = vmatpush1.msra.mxu0 0.0
      %2379 = vmatprep.subr.mxu0 0.0
      %2380 = vmatpush1.msra.mxu0 0.0
      %2381 = vmatprep.subr.mxu0 0.0
      %2382 = vmatpush1.msra.mxu0 0.0
      %2383 = vmatprep.subr.mxu0 0.0
      %2384 = vmatpush1.msra.mxu0 0.0
      %2385 = vmatprep.subr.mxu0 0.0
      %2386 = vmatpush1.msra.mxu0 0.0
      %2387 = vmatprep.mubr.f32.mxu0 0.0
      %2388 = vmatmul.mubr.f32.gmra.mrb[0].mxu0 %v2300
      %v2389 = vpop.f32.mrb[0].mxu0
      %v2390 = vadd.f32 %v2262, %v2389
      %v2391 = vpop.f32.mrb[0].mxu0
      %2392 = vmatprep.mubr.f32.mxu0 0.0
      %2393 = vmatmul.mubr.f32.gmra.mrb[0].mxu0 %v2303
      %v2394 = vpop.f32.mrb[0].mxu0
      %v2395 = vadd.f32 %v2267, %v2394
      %v2396 = vpop.f32.mrb[0].mxu0
      %2397 = vmatprep.mubr.f32.mxu0 0.0
      %2398 = vmatmul.mubr.f32.gmra.mrb[0].mxu0 %v2306
      %v2399 = vpop.f32.mrb[0].mxu0
      %v2400 = vadd.f32 %v2272, %v2399
      %v2401 = vpop.f32.mrb[0].mxu0
      %2402 = vmatprep.mubr.f32.mxu0 0.0
      %2403 = vmatmul.mubr.f32.gmra.mrb[0].mxu0 %v2309
      %v2404 = vpop.f32.mrb[0].mxu0
      %v2405 = vadd.f32 %v2277, %v2404
      %v2406 = vpop.f32.mrb[0].mxu0
      %2407 = vmatprep.mubr.f32.mxu0 0.0
      %2408 = vmatmul.mubr.f32.gmra.mrb[0].mxu0 %v2312
      %v2409 = vpop.f32.mrb[0].mxu0
      %v2410 = vadd.f32 %v2282, %v2409
      %v2411 = vpop.f32.mrb[0].mxu0
      %2412 = vmatprep.mubr.f32.mxu0 0.0
      %2413 = vmatmul.mubr.f32.gmra.mrb[0].mxu0 %v2315
      %v2414 = vpop.f32.mrb[0].mxu0
      %v2415 = vadd.f32 %v2287, %v2414
      %v2416 = vpop.f32.mrb[0].mxu0
      %2417 = vmatprep.mubr.f32.mxu0 0.0
      %2418 = vmatmul.mubr.f32.gmra.mrb[0].mxu0 %v2318
      %v2419 = vpop.f32.mrb[0].mxu0
      %v2420 = vadd.f32 %v2292, %v2419
      %v2421 = vpop.f32.mrb[0].mxu0
      %2422 = vmatprep.mubr.f32.mxu0 0.0
      %2423 = vmatmul.mubr.f32.gmra.mrb[0].mxu0 %v2321
      %v2424 = vpop.f32.mrb[0].mxu0
      %v2425 = vadd.f32 %v2297, %v2424
      %v2426 = vpop.f32.mrb[0].mxu0
      %2427 = vdwg.mxu0
      %v2428 = vld [vmem:[%s12] sm:$0xff]
      %v2429 = vld [vmem:[%s12 + $0x8] sm:$0xff]
      %v2430 = vld [vmem:[%s12 + $0x10] sm:$0xff]
      %v2431 = vld [vmem:[%s12 + $0x18] sm:$0xff]
      %v2432 = vld [vmem:[%s12 + $0x20] sm:$0xff]
      %v2433 = vld [vmem:[%s12 + $0x28] sm:$0xff]
      %v2434 = vld [vmem:[%s12 + $0x30] sm:$0xff]
      %v2435 = vld [vmem:[%s12 + $0x38] sm:$0xff]
      %v2436 = vld [vmem:[%s13] sm:$0xff]
      %v2437 = vld [vmem:[%s13 + $0x8] sm:$0xff]
      %v2438 = vld [vmem:[%s13 + $0x10] sm:$0xff]
      %v2439 = vld [vmem:[%s13 + $0x18] sm:$0xff]
      %v2440 = vld [vmem:[%s13 + $0x20] sm:$0xff]
      %v2441 = vld [vmem:[%s13 + $0x28] sm:$0xff]
      %v2442 = vld [vmem:[%s13 + $0x30] sm:$0xff]
      %v2443 = vld [vmem:[%s13 + $0x38] sm:$0xff]
      %2445 = vset.pattern.permute.xlu0 0
      %2446 = vperm.xlu0 %2445, %v2436
      %v2447 = vpop.permute.xlu0 %2446
      %2450 = vset.pattern.permute.xlu0 0
      %2451 = vperm.xlu0 %2450, %v2437
      %v2452 = vpop.permute.xlu0 %2451
      %2455 = vset.pattern.permute.xlu0 0
      %2456 = vperm.xlu0 %2455, %v2438
      %v2457 = vpop.permute.xlu0 %2456
      %2460 = vset.pattern.permute.xlu0 0
      %2461 = vperm.xlu0 %2460, %v2439
      %v2462 = vpop.permute.xlu0 %2461
      %2465 = vset.pattern.permute.xlu0 0
      %2466 = vperm.xlu0 %2465, %v2440
      %v2467 = vpop.permute.xlu0 %2466
      %2470 = vset.pattern.permute.xlu0 0
      %2471 = vperm.xlu0 %2470, %v2441
      %v2472 = vpop.permute.xlu0 %2471
      %2475 = vset.pattern.permute.xlu0 0
      %2476 = vperm.xlu0 %2475, %v2442
      %v2477 = vpop.permute.xlu0 %2476
      %2480 = vset.pattern.permute.xlu0 0
      %2481 = vperm.xlu0 %2480, %v2443
      %v2482 = vpop.permute.xlu0 %2481
      %v2485 = vsel %vm629, %v2428, 0
      %v2488 = vsel %vm629, %v2429, 0
      %v2491 = vsel %vm629, %v2430, 0
      %v2494 = vsel %vm629, %v2431, 0
      %v2497 = vsel %vm629, %v2432, 0
      %v2500 = vsel %vm629, %v2433, 0
      %v2503 = vsel %vm629, %v2434, 0
      %v2506 = vsel %vm629, %v2435, 0
      %2508 = vmatprep.subr.mxu0 0.0
      %2509 = vmatpush1.msra.mxu0 %v2390
      %2510 = vmatprep.subr.mxu0 0.0
      %2511 = vmatpush1.msra.mxu0 %v2395
      %2512 = vmatprep.subr.mxu0 0.0
      %2513 = vmatpush1.msra.mxu0 %v2400
      %2514 = vmatprep.subr.mxu0 0.0
      %2515 = vmatpush1.msra.mxu0 %v2405
      %2516 = vmatprep.subr.mxu0 0.0
      %2517 = vmatpush1.msra.mxu0 %v2410
      %2518 = vmatprep.subr.mxu0 0.0
      %2519 = vmatpush1.msra.mxu0 %v2415
      %2520 = vmatprep.subr.mxu0 0.0
      %2521 = vmatpush1.msra.mxu0 %v2420
      %2522 = vmatprep.subr.mxu0 0.0
      %2523 = vmatpush1.msra.mxu0 %v2425
      %2524 = vmatprep.subr.mxu0 0.0
      %2525 = vmatpush1.msra.mxu0 0.0
      %2526 = vmatprep.subr.mxu0 0.0
      %2527 = vmatpush1.msra.mxu0 0.0
      %2528 = vmatprep.subr.mxu0 0.0
      %2529 = vmatpush1.msra.mxu0 0.0
      %2530 = vmatprep.subr.mxu0 0.0
      %2531 = vmatpush1.msra.mxu0 0.0
      %2532 = vmatprep.subr.mxu0 0.0
      %2533 = vmatpush1.msra.mxu0 0.0
      %2534 = vmatprep.subr.mxu0 0.0
      %2535 = vmatpush1.msra.mxu0 0.0
      %2536 = vmatprep.subr.mxu0 0.0
      %2537 = vmatpush1.msra.mxu0 0.0
      %2538 = vmatprep.subr.mxu0 0.0
      %2539 = vmatpush1.msra.mxu0 0.0
      %2540 = vmatprep.subr.mxu0 0.0
      %2541 = vmatpush1.msra.mxu0 0.0
      %2542 = vmatprep.subr.mxu0 0.0
      %2543 = vmatpush1.msra.mxu0 0.0
      %2544 = vmatprep.subr.mxu0 0.0
      %2545 = vmatpush1.msra.mxu0 0.0
      %2546 = vmatprep.subr.mxu0 0.0
      %2547 = vmatpush1.msra.mxu0 0.0
      %2548 = vmatprep.subr.mxu0 0.0
      %2549 = vmatpush1.msra.mxu0 0.0
      %2550 = vmatprep.subr.mxu0 0.0
      %2551 = vmatpush1.msra.mxu0 0.0
      %2552 = vmatprep.subr.mxu0 0.0
      %2553 = vmatpush1.msra.mxu0 0.0
      %2554 = vmatprep.subr.mxu0 0.0
      %2555 = vmatpush1.msra.mxu0 0.0
      %2556 = vmatprep.subr.mxu0 0.0
      %2557 = vmatpush1.msra.mxu0 0.0
      %2558 = vmatprep.subr.mxu0 0.0
      %2559 = vmatpush1.msra.mxu0 0.0
      %2560 = vmatprep.subr.mxu0 0.0
      %2561 = vmatpush1.msra.mxu0 0.0
      %2562 = vmatprep.subr.mxu0 0.0
      %2563 = vmatpush1.msra.mxu0 0.0
      %2564 = vmatprep.subr.mxu0 0.0
      %2565 = vmatpush1.msra.mxu0 0.0
      %2566 = vmatprep.subr.mxu0 0.0
      %2567 = vmatpush1.msra.mxu0 0.0
      %2568 = vmatprep.subr.mxu0 0.0
      %2569 = vmatpush1.msra.mxu0 0.0
      %2570 = vmatprep.subr.mxu0 0.0
      %2571 = vmatpush1.msra.mxu0 0.0
      %2572 = vmatprep.mubr.f32.mxu0 0.0
      %2573 = vmatmul.mubr.f32.gmra.mrb[0].mxu0 %v2485
      %v2574 = vpop.f32.mrb[0].mxu0
      %v2575 = vadd.f32 %v2447, %v2574
      %v2576 = vpop.f32.mrb[0].mxu0
      %2577 = vmatprep.mubr.f32.mxu0 0.0
      %2578 = vmatmul.mubr.f32.gmra.mrb[0].mxu0 %v2488
      %v2579 = vpop.f32.mrb[0].mxu0
      %v2580 = vadd.f32 %v2452, %v2579
      %v2581 = vpop.f32.mrb[0].mxu0
      %2582 = vmatprep.mubr.f32.mxu0 0.0
      %2583 = vmatmul.mubr.f32.gmra.mrb[0].mxu0 %v2491
      %v2584 = vpop.f32.mrb[0].mxu0
      %v2585 = vadd.f32 %v2457, %v2584
      %v2586 = vpop.f32.mrb[0].mxu0
      %2587 = vmatprep.mubr.f32.mxu0 0.0
      %2588 = vmatmul.mubr.f32.gmra.mrb[0].mxu0 %v2494
      %v2589 = vpop.f32.mrb[0].mxu0
      %v2590 = vadd.f32 %v2462, %v2589
      %v2591 = vpop.f32.mrb[0].mxu0
      %2592 = vmatprep.mubr.f32.mxu0 0.0
      %2593 = vmatmul.mubr.f32.gmra.mrb[0].mxu0 %v2497
      %v2594 = vpop.f32.mrb[0].mxu0
      %v2595 = vadd.f32 %v2467, %v2594
      %v2596 = vpop.f32.mrb[0].mxu0
      %2597 = vmatprep.mubr.f32.mxu0 0.0
      %2598 = vmatmul.mubr.f32.gmra.mrb[0].mxu0 %v2500
      %v2599 = vpop.f32.mrb[0].mxu0
      %v2600 = vadd.f32 %v2472, %v2599
      %v2601 = vpop.f32.mrb[0].mxu0
      %2602 = vmatprep.mubr.f32.mxu0 0.0
      %2603 = vmatmul.mubr.f32.gmra.mrb[0].mxu0 %v2503
      %v2604 = vpop.f32.mrb[0].mxu0
      %v2605 = vadd.f32 %v2477, %v2604
      %v2606 = vpop.f32.mrb[0].mxu0
      %2607 = vmatprep.mubr.f32.mxu0 0.0
      %2608 = vmatmul.mubr.f32.gmra.mrb[0].mxu0 %v2506
      %v2609 = vpop.f32.mrb[0].mxu0
      %v2610 = vadd.f32 %v2482, %v2609
      %v2611 = vpop.f32.mrb[0].mxu0
      %2612 = vdwg.mxu0
      %v2613 = vld [vmem:[%s2] sm:$0xff]
      %v2614 = vld [vmem:[%s2 + $0x8] sm:$0xff]
      %v2615 = vld [vmem:[%s2 + $0x10] sm:$0xff]
      %v2616 = vld [vmem:[%s2 + $0x18] sm:$0xff]
      %v2618 = vsel %vm872, %v2575, 0
      %v2621 = vsel %vm872, %v2580, 0
      %v2624 = vsel %vm872, %v2585, 0
      %v2627 = vsel %vm872, %v2590, 0
      %v2630 = vsel %vm872, %v2595, 0
      %v2633 = vsel %vm872, %v2600, 0
      %v2636 = vsel %vm872, %v2605, 0
      %v2639 = vsel %vm872, %v2610, 0
      %2641 = vmatprep.subr.mxu0 %v2614
      %2642 = vmatpush1.msra.mxu0 %v2613
      %2643 = vmatprep.subr.mxu0 %v2616
      %2644 = vmatpush1.msra.mxu0 %v2615
      %2645 = vmatprep.subr.mxu0 0.0
      %2646 = vmatpush1.msra.mxu0 0.0
      %2647 = vmatprep.subr.mxu0 0.0
      %2648 = vmatpush1.msra.mxu0 0.0
      %2649 = vmatprep.subr.mxu0 0.0
      %2650 = vmatpush1.msra.mxu0 0.0
      %2651 = vmatprep.subr.mxu0 0.0
      %2652 = vmatpush1.msra.mxu0 0.0
      %2653 = vmatprep.subr.mxu0 0.0
      %2654 = vmatpush1.msra.mxu0 0.0
      %2655 = vmatprep.subr.mxu0 0.0
      %2656 = vmatpush1.msra.mxu0 0.0
      %2657 = vmatprep.subr.mxu0 0.0
      %2658 = vmatpush1.msra.mxu0 0.0
      %2659 = vmatprep.subr.mxu0 0.0
      %2660 = vmatpush1.msra.mxu0 0.0
      %2661 = vmatprep.subr.mxu0 0.0
      %2662 = vmatpush1.msra.mxu0 0.0
      %2663 = vmatprep.subr.mxu0 0.0
      %2664 = vmatpush1.msra.mxu0 0.0
      %2665 = vmatprep.subr.mxu0 0.0
      %2666 = vmatpush1.msra.mxu0 0.0
      %2667 = vmatprep.subr.mxu0 0.0
      %2668 = vmatpush1.msra.mxu0 0.0
      %2669 = vmatprep.subr.mxu0 0.0
      %2670 = vmatpush1.msra.mxu0 0.0
      %2671 = vmatprep.subr.mxu0 0.0
      %2672 = vmatpush1.msra.mxu0 0.0
      %2673 = vmatprep.subr.mxu0 0.0
      %2674 = vmatpush1.msra.mxu0 0.0
      %2675 = vmatprep.subr.mxu0 0.0
      %2676 = vmatpush1.msra.mxu0 0.0
      %2677 = vmatprep.subr.mxu0 0.0
      %2678 = vmatpush1.msra.mxu0 0.0
      %2679 = vmatprep.subr.mxu0 0.0
      %2680 = vmatpush1.msra.mxu0 0.0
      %2681 = vmatprep.subr.mxu0 0.0
      %2682 = vmatpush1.msra.mxu0 0.0
      %2683 = vmatprep.subr.mxu0 0.0
      %2684 = vmatpush1.msra.mxu0 0.0
      %2685 = vmatprep.subr.mxu0 0.0
      %2686 = vmatpush1.msra.mxu0 0.0
      %2687 = vmatprep.subr.mxu0 0.0
      %2688 = vmatpush1.msra.mxu0 0.0
      %2689 = vmatprep.subr.mxu0 0.0
      %2690 = vmatpush1.msra.mxu0 0.0
      %2691 = vmatprep.subr.mxu0 0.0
      %2692 = vmatpush1.msra.mxu0 0.0
      %2693 = vmatprep.subr.mxu0 0.0
      %2694 = vmatpush1.msra.mxu0 0.0
      %2695 = vmatprep.subr.mxu0 0.0
      %2696 = vmatpush1.msra.mxu0 0.0
      %2697 = vmatprep.subr.mxu0 0.0
      %2698 = vmatpush1.msra.mxu0 0.0
      %2699 = vmatprep.subr.mxu0 0.0
      %2700 = vmatpush1.msra.mxu0 0.0
      %2701 = vmatprep.subr.mxu0 0.0
      %2702 = vmatpush1.msra.mxu0 0.0
      %2703 = vmatprep.subr.mxu0 0.0
      %2704 = vmatpush1.msra.mxu0 0.0
      %2705 = vmatprep.mubr.f32.mxu0 0.0
      %2706 = vmatmul.mubr.f32.gmra.mrb[0].mxu0 %v2618
      %v2707 = vpop.f32.mrb[0].mxu0
      %v2708 = vadd.f32 0.0, %v2707
      %v2709 = vpop.f32.mrb[0].mxu0
      %v2710 = vadd.f32 0.0, %v2709
      %2711 = vmatprep.mubr.f32.mxu0 0.0
      %2712 = vmatmul.mubr.f32.gmra.mrb[0].mxu0 %v2621
      %v2713 = vpop.f32.mrb[0].mxu0
      %v2714 = vadd.f32 0.0, %v2713
      %v2715 = vpop.f32.mrb[0].mxu0
      %v2716 = vadd.f32 0.0, %v2715
      %2717 = vmatprep.mubr.f32.mxu0 0.0
      %2718 = vmatmul.mubr.f32.gmra.mrb[0].mxu0 %v2624
      %v2719 = vpop.f32.mrb[0].mxu0
      %v2720 = vadd.f32 0.0, %v2719
      %v2721 = vpop.f32.mrb[0].mxu0
      %v2722 = vadd.f32 0.0, %v2721
      %2723 = vmatprep.mubr.f32.mxu0 0.0
      %2724 = vmatmul.mubr.f32.gmra.mrb[0].mxu0 %v2627
      %v2725 = vpop.f32.mrb[0].mxu0
      %v2726 = vadd.f32 0.0, %v2725
      %v2727 = vpop.f32.mrb[0].mxu0
      %v2728 = vadd.f32 0.0, %v2727
      %2729 = vmatprep.mubr.f32.mxu0 0.0
      %2730 = vmatmul.mubr.f32.gmra.mrb[0].mxu0 %v2630
      %v2731 = vpop.f32.mrb[0].mxu0
      %v2732 = vadd.f32 0.0, %v2731
      %v2733 = vpop.f32.mrb[0].mxu0
      %v2734 = vadd.f32 0.0, %v2733
      %2735 = vmatprep.mubr.f32.mxu0 0.0
      %2736 = vmatmul.mubr.f32.gmra.mrb[0].mxu0 %v2633
      %v2737 = vpop.f32.mrb[0].mxu0
      %v2738 = vadd.f32 0.0, %v2737
      %v2739 = vpop.f32.mrb[0].mxu0
      %v2740 = vadd.f32 0.0, %v2739
      %2741 = vmatprep.mubr.f32.mxu0 0.0
      %2742 = vmatmul.mubr.f32.gmra.mrb[0].mxu0 %v2636
      %v2743 = vpop.f32.mrb[0].mxu0
      %v2744 = vadd.f32 0.0, %v2743
      %v2745 = vpop.f32.mrb[0].mxu0
      %v2746 = vadd.f32 0.0, %v2745
      %2747 = vmatprep.mubr.f32.mxu0 0.0
      %2748 = vmatmul.mubr.f32.gmra.mrb[0].mxu0 %v2639
      %v2749 = vpop.f32.mrb[0].mxu0
      %v2750 = vadd.f32 0.0, %v2749
      %v2751 = vpop.f32.mrb[0].mxu0
      %v2752 = vadd.f32 0.0, %v2751
      %2753 = vdwg.mxu0
      %v2754 = vadd.f32 %v468, %v2708
      %v2755 = vadd.f32 %v469, %v2710
      %v2756 = vadd.f32 %v470, %v2714
      %v2757 = vadd.f32 %v471, %v2716
      %v2758 = vadd.f32 %v472, %v2720
      %v2759 = vadd.f32 %v473, %v2722
      %v2760 = vadd.f32 %v474, %v2726
      %v2761 = vadd.f32 %v475, %v2728
      %v2762 = vadd.f32 %v476, %v2732
      %v2763 = vadd.f32 %v477, %v2734
      %v2764 = vadd.f32 %v478, %v2738
      %v2765 = vadd.f32 %v479, %v2740
      %v2766 = vadd.f32 %v480, %v2744
      %v2767 = vadd.f32 %v481, %v2746
      %v2768 = vadd.f32 %v482, %v2750
      %v2769 = vadd.f32 %v483, %v2752
      %2770 = vst [vmem:[%s467] sm:$0xff] %v2754
      %2771 = vst [vmem:[%s467 + $0x8] sm:$0xff] %v2755
      %2772 = vst [vmem:[%s467 + $0x10] sm:$0xff] %v2756
      %2773 = vst [vmem:[%s467 + $0x18] sm:$0xff] %v2757
      %2774 = vst [vmem:[%s467 + $0x20] sm:$0xff] %v2758
      %2775 = vst [vmem:[%s467 + $0x28] sm:$0xff] %v2759
      %2776 = vst [vmem:[%s467 + $0x30] sm:$0xff] %v2760
      %2777 = vst [vmem:[%s467 + $0x38] sm:$0xff] %v2761
      %2778 = vst [vmem:[%s467 + $0x40] sm:$0xff] %v2762
      %2779 = vst [vmem:[%s467 + $0x48] sm:$0xff] %v2763
      %2780 = vst [vmem:[%s467 + $0x50] sm:$0xff] %v2764
      %2781 = vst [vmem:[%s467 + $0x58] sm:$0xff] %v2765
      %2782 = vst [vmem:[%s467 + $0x60] sm:$0xff] %v2766
      %2783 = vst [vmem:[%s467 + $0x68] sm:$0xff] %v2767
      %2784 = vst [vmem:[%s467 + $0x70] sm:$0xff] %v2768
      %2785 = vst [vmem:[%s467 + $0x78] sm:$0xff] %v2769
      %p2786 = scmp.lt.s32.totalorder %s25, 1
      %s2787 = scalar_select %p2786, %s25, 1
      %s2788 = smul.addr %s2787, 16
      %s2789 = smul.addr %s2788, 8
      %s2790 = scalar_lea.vmem %s14, %s2789
      // Predicated region
      $region77: #{_lambda_.1} parent=75 // pred_check
        %p2791 = pneg %p342
      $region78: #{_lambda_.1} parent=75 // pred_check_branch
        %2793 = sbr.rel (%p2791) target = $region80
      $region79: #{_lambda_.1} parent=75 // pred_region
        _
      $region80: #{_lambda_.1} parent=75 // pred_fallthru
        _
    $region76: #{_lambda_.1} parent=5 // pred_fallthru
      _
    %p2794 = scmp.le.s32.totalorder 2, %s20
    // Predicated region
    $region81: #{_lambda_.1} parent=5 // pred_check
      %p2795 = pneg %p2794
    $region82: #{_lambda_.1} parent=5 // pred_check_branch
      %2797 = sbr.rel (%p2795) target = $region84
    $region83: #{_lambda_.1} parent=5 // pred_region
      %s2798 = ssub.s32 %s20, 2
      // Predicated region
      $region85: #{_lambda_.1} parent=83 // pred_check
        %p2799 = pneg %p348
      $region86: #{_lambda_.1} parent=83 // pred_check_branch
        %2801 = sbr.rel (%p2799) target = $region88
      $region87: #{_lambda_.1} parent=83 // pred_region
        %p2802 = scmp.lt.s32.totalorder %s26, 1
        %s2803 = scalar_select %p2802, %s26, 1
        %s2804 = smul.addr %s2803, 16
        %s2805 = smul.addr %s2804, 8
        %s2806 = scalar_lea.vmem %s14, %s2805
      $region88: #{_lambda_.1} parent=83 // pred_fallthru
        _
    $region84: #{_lambda_.1} parent=5 // pred_fallthru
      _
  $region6: #{_lambda_.1} parent=0 // loop_footer
    %s24 = sadd.s32 1, %s20
  $region7: #{_lambda_.1} parent=0 // loop_footer_branch
    %19 = sbr.rel target = $region3
  $region8: #{_lambda_.1} parent=0 // loop_exit
    _

</llo_original>
